<compile_context>
chip_gen: v5e
topology: v5e:2x2
jax: 0.10.0
libtpu: 0.0.40
codegen_flags: <defaults>
</compile_context>

<pallas_src>
import numpy as np
import jax
import jax.numpy as jnp
from jax.experimental import pallas as pl
from jax.experimental.pallas import tpu as pltpu

# ----------------------------- config (small, consistent with module) --------
N_CLASSES = 10
CHANNELS = 1
IMG_SIZE = 16
IMG_SHAPE = (CHANNELS, IMG_SIZE, IMG_SIZE)
IMG_FLAT = int(np.prod(IMG_SHAPE))    # 256 (already a multiple of 128)
D_IN = N_CLASSES + IMG_FLAT           # 266 (original logical input width)
HIDDEN = 512
BATCH = 4


# ----------------------------- Pallas kernel ---------------------------------
def _disc_mlp_kernel(img_ref, emb_row_ref,
                     w1i_ref, b1_ref,
                     w2_ref, b2_ref,
                     w3_ref, b3_ref,
                     w4_ref, b4_ref,
                     out_ref):
    # img_ref    : (B, 256)   bf16  flattened image
    # emb_row_ref: (B, 512)   f32   folded embedding contribution emb_proj[labels]
    # w1i        : (256, 512) bf16  image part of first-layer weight
    # w2, w3     : (512, 512) bf16
    # w4         : (1, 512)   f32   last-layer weight row (true shape, no padding)
    # b1..b3     : (1, 512)   f32 ; b4 : (1, 1) f32 ; out_ref : (B, 1) f32
    lrelu = lambda v: jnp.maximum(v, 0.2 * v)

    # Linear(266 -> 512): image matmul on MXU + folded embedding row + bias.
    h = (jnp.dot(img_ref[...], w1i_ref[...], preferred_element_type=jnp.float32)
         + emb_row_ref[...] + b1_ref[...])
    h = lrelu(h)

    # Linear(512 -> 512) + Dropout(identity) + LeakyReLU(0.2)
    h = jnp.dot(h.astype(jnp.bfloat16), w2_ref[...],
                preferred_element_type=jnp.float32) + b2_ref[...]
    h = lrelu(h)

    # Linear(512 -> 512) + Dropout(identity) + LeakyReLU(0.2)
    h = jnp.dot(h.astype(jnp.bfloat16), w3_ref[...],
                preferred_element_type=jnp.float32) + b3_ref[...]
    h = lrelu(h)

    # Linear(512 -> 1) + Sigmoid: VPU multiply + XLU lane reduce (no MXU pass,
    # no zero-padded weight DMA).
    logits = jnp.sum(h * w4_ref[...], axis=-1, keepdims=True) + b4_ref[...]
    out_ref[...] = jax.nn.sigmoid(logits)


# ----------------------------- param preparation ------------------------------
def prepare_kernel_params(params):
    """f32 'training layout' params -> kernel-ready bf16 / folded layout."""
    w1 = params["w1"]                                            # (266, 512) f32
    w1_img = w1[:IMG_FLAT].astype(jnp.bfloat16)                  # (256, 512) bf16
    # Fold nn.Embedding through the embedding half of w1: (10,10) @ (10,512).
    emb_proj = params["emb"] @ w1[IMG_FLAT:]                     # (10, 512) f32

    w4_row = params["w4"].T.astype(jnp.float32)                  # (1, 512) f32
    b4 = params["b4"].astype(jnp.float32)                        # (1, 1) f32

    return dict(
        emb_proj=emb_proj,
        w1_img=w1_img, b1=params["b1"].astype(jnp.float32),
        w2=params["w2"].astype(jnp.bfloat16), b2=params["b2"].astype(jnp.float32),
        w3=params["w3"].astype(jnp.bfloat16), b3=params["b3"].astype(jnp.float32),
        w4_row=w4_row, b4=b4,
    )


# ----------------------------- forward wrapper --------------------------------
@jax.jit
def discriminator_forward(img, labels, kp):
    """img: (B, C, H, W) float32 (NCHW, like PyTorch); labels: (B,) int32."""
    B = img.shape[0]
    img_flat = img.reshape(B, -1).astype(jnp.bfloat16)            # (B, 256) bf16
    emb_rows = jnp.take(kp["emb_proj"], labels, axis=0)           # (B, 512) f32

    full = lambda shape: pl.BlockSpec(shape, lambda: (0,) * len(shape),
                                      memory_space=pltpu.VMEM)

    # Rough advisory costs: 3 matmuls + one reduce; ~1.3 MB of weight traffic.
    flops = 2 * B * (IMG_FLAT * HIDDEN + 2 * HIDDEN * HIDDEN + HIDDEN)
    bytes_accessed = (IMG_FLAT * HIDDEN + 2 * HIDDEN * HIDDEN) * 2 \
        + (3 * HIDDEN + HIDDEN + 1) * 4 + B * (IMG_FLAT * 2 + HIDDEN * 4 + 4)

    out = pl.pallas_call(
        _disc_mlp_kernel,
        out_shape=jax.ShapeDtypeStruct((B, 1), jnp.float32),
        in_specs=[
            full((B, IMG_FLAT)), full((B, HIDDEN)),
            full((IMG_FLAT, HIDDEN)), full((1, HIDDEN)),
            full((HIDDEN, HIDDEN)), full((1, HIDDEN)),
            full((HIDDEN, HIDDEN)), full((1, HIDDEN)),
            full((1, HIDDEN)), full((1, 1)),
        ],
        out_specs=full((B, 1)),
        cost_estimate=pl.CostEstimate(flops=flops, transcendentals=B,
                                      bytes_accessed=bytes_accessed),
    )(img_flat, emb_rows,
      kp["w1_img"], kp["b1"],
      kp["w2"], kp["b2"],
      kp["w3"], kp["b3"],
      kp["w4_row"], kp["b4"])
    return out                                                    # (B, 1)


# ----------------------------- deterministic param init ----------------------
def init_params(key):
    ks = jax.random.split(key, 9)

    def linear(kw, fan_in, fan_out):
        # PyTorch nn.Linear default init: U(-1/sqrt(fan_in), 1/sqrt(fan_in))
        lim = 1.0 / np.sqrt(fan_in)
        w = jax.random.uniform(kw, (fan_in, fan_out), jnp.float32, -lim, lim)
        b = jax.random.uniform(jax.random.fold_in(kw, 1), (1, fan_out),
                               jnp.float32, -lim, lim)
        return w, b

    emb = jax.random.normal(ks[0], (N_CLASSES, N_CLASSES), jnp.float32)  # nn.Embedding ~ N(0,1)
    w1, b1 = linear(ks[1], D_IN, HIDDEN)
    w2, b2 = linear(ks[2], HIDDEN, HIDDEN)
    w3, b3 = linear(ks[3], HIDDEN, HIDDEN)
    w4, b4 = linear(ks[4], HIDDEN, 1)
    return dict(emb=emb, w1=w1, b1=b1, w2=w2, b2=b2, w3=w3, b3=b3, w4=w4, b4=b4)


# ----------------------------- references -------------------------------------
def reference_forward_bf16(img, labels, kp):
    """Pure-JAX reference with the SAME bf16-quantized / folded layout."""
    B = img.shape[0]
    f32 = lambda a: a.astype(jnp.float32)
    img_flat = f32(img.reshape(B, -1).astype(jnp.bfloat16))
    lrelu = lambda v: jnp.maximum(v, 0.2 * v)
    h = lrelu(img_flat @ f32(kp["w1_img"]) + kp["emb_proj"][labels] + kp["b1"])
    h = lrelu(f32(h.astype(jnp.bfloat16)) @ f32(kp["w2"]) + kp["b2"])
    h = lrelu(f32(h.astype(jnp.bfloat16)) @ f32(kp["w3"]) + kp["b3"])
    logits = jnp.sum(h * kp["w4_row"], axis=-1, keepdims=True) + kp["b4"]
    return jax.nn.sigmoid(logits)


def reference_forward_f32(img, labels, p):
    """Original full-f32 reference (semantics of the PyTorch module)."""
    B = img.shape[0]
    x = jnp.concatenate([img.reshape(B, -1), p["emb"][labels]], axis=-1)
    lrelu = lambda v: jnp.where(v > 0, v, 0.2 * v)
    h = lrelu(x @ p["w1"] + p["b1"])
    h = lrelu(h @ p["w2"] + p["b2"])
    h = lrelu(h @ p["w3"] + p["b3"])
    return jax.nn.sigmoid(h @ p["w4"] + p["b4"])


if __name__ == "__main__":
    key = jax.random.PRNGKey(0)
    k_img, k_lab, k_par = jax.random.split(key, 3)

    img = jax.random.normal(k_img, (BATCH,) + IMG_SHAPE, jnp.float32)   # NCHW
    labels = jax.random.randint(k_lab, (BATCH,), 0, N_CLASSES, jnp.int32)
    params = init_params(k_par)
    kparams = prepare_kernel_params(params)

    out = discriminator_forward(img, labels, kparams)
    out = jax.block_until_ready(out)

    # Exact-path check (same bf16 weights / folded embedding, f32 accumulation).
    ref_bf16 = reference_forward_bf16(img, labels, kparams)
    np.testing.assert_allclose(np.asarray(out), np.asarray(ref_bf16),
                               rtol=1e-4, atol=1e-4)

    # Loose semantic check against the full-f32 module (bf16 quantization noise).
    ref_f32 = reference_forward_f32(img, labels, params)
    np.testing.assert_allclose(np.asarray(out), np.asarray(ref_f32),
                               rtol=0.0, atol=5e-2)

    assert out.shape == (BATCH, 1)
    print("KERNEL_OK")
</pallas_src>

<mosaic_0001>
module attributes {stable_mosaic.version = 11 : i64} {
  func.func @_disc_mlp_kernel(%arg0: memref<4x256xbf16, #tpu.memory_space<vmem>>, %arg1: memref<4x512xf32, #tpu.memory_space<vmem>>, %arg2: memref<256x512xbf16, #tpu.memory_space<vmem>>, %arg3: memref<1x512xf32, #tpu.memory_space<vmem>>, %arg4: memref<512x512xbf16, #tpu.memory_space<vmem>>, %arg5: memref<1x512xf32, #tpu.memory_space<vmem>>, %arg6: memref<512x512xbf16, #tpu.memory_space<vmem>>, %arg7: memref<1x512xf32, #tpu.memory_space<vmem>>, %arg8: memref<1x512xf32, #tpu.memory_space<vmem>>, %arg9: memref<1x1xf32, #tpu.memory_space<vmem>>, %arg10: memref<4x1xf32, #tpu.memory_space<vmem>>) attributes {dimension_semantics = [], scalar_prefetch = 0 : i64, scratch_operands = 0 : i64, tpu.core_type = #tpu.core_type<tc>} {
    %c0 = arith.constant 0 : index
    %c0_0 = arith.constant 0 : index
    %0 = vector.load %arg0[%c0, %c0_0] : memref<4x256xbf16, #tpu.memory_space<vmem>>, vector<4x256xbf16>
    %c0_1 = arith.constant 0 : index
    %c0_2 = arith.constant 0 : index
    %1 = vector.load %arg2[%c0_1, %c0_2] : memref<256x512xbf16, #tpu.memory_space<vmem>>, vector<256x512xbf16>
    %cst = arith.constant dense<0.000000e+00> : vector<4x512xf32>
    %2 = tpu.matmul %0, %1, %cst {dimension_numbers = #tpu.dot_dimension_numbers<[1], [0], [0], [1], [0, 0, 1, 1], [], []>} : vector<4x256xbf16>, vector<256x512xbf16>, vector<4x512xf32> -> vector<4x512xf32>
    %c0_3 = arith.constant 0 : index
    %c0_4 = arith.constant 0 : index
    %3 = vector.load %arg1[%c0_3, %c0_4] : memref<4x512xf32, #tpu.memory_space<vmem>>, vector<4x512xf32>
    %4 = arith.addf %2, %3 : vector<4x512xf32>
    %c0_5 = arith.constant 0 : index
    %c0_6 = arith.constant 0 : index
    %5 = vector.load %arg3[%c0_5, %c0_6] : memref<1x512xf32, #tpu.memory_space<vmem>>, vector<1x512xf32>
    %6 = vector.broadcast %5 : vector<1x512xf32> to vector<4x512xf32>
    %7 = arith.addf %4, %6 : vector<4x512xf32>
    %cst_7 = arith.constant 2.000000e-01 : f32
    %8 = vector.broadcast %cst_7 : f32 to vector<4x512xf32>
    %9 = arith.mulf %8, %7 : vector<4x512xf32>
    %10 = arith.maximumf %7, %9 : vector<4x512xf32>
    %11 = arith.truncf %10 : vector<4x512xf32> to vector<4x512xbf16>
    %c0_8 = arith.constant 0 : index
    %c0_9 = arith.constant 0 : index
    %12 = vector.load %arg4[%c0_8, %c0_9] : memref<512x512xbf16, #tpu.memory_space<vmem>>, vector<512x512xbf16>
    %cst_10 = arith.constant dense<0.000000e+00> : vector<4x512xf32>
    %13 = tpu.matmul %11, %12, %cst_10 {dimension_numbers = #tpu.dot_dimension_numbers<[1], [0], [0], [1], [0, 0, 1, 1], [], []>} : vector<4x512xbf16>, vector<512x512xbf16>, vector<4x512xf32> -> vector<4x512xf32>
    %c0_11 = arith.constant 0 : index
    %c0_12 = arith.constant 0 : index
    %14 = vector.load %arg5[%c0_11, %c0_12] : memref<1x512xf32, #tpu.memory_space<vmem>>, vector<1x512xf32>
    %15 = vector.broadcast %14 : vector<1x512xf32> to vector<4x512xf32>
    %16 = arith.addf %13, %15 : vector<4x512xf32>
    %cst_13 = arith.constant 2.000000e-01 : f32
    %17 = vector.broadcast %cst_13 : f32 to vector<4x512xf32>
    %18 = arith.mulf %17, %16 : vector<4x512xf32>
    %19 = arith.maximumf %16, %18 : vector<4x512xf32>
    %20 = arith.truncf %19 : vector<4x512xf32> to vector<4x512xbf16>
    %c0_14 = arith.constant 0 : index
    %c0_15 = arith.constant 0 : index
    %21 = vector.load %arg6[%c0_14, %c0_15] : memref<512x512xbf16, #tpu.memory_space<vmem>>, vector<512x512xbf16>
    %cst_16 = arith.constant dense<0.000000e+00> : vector<4x512xf32>
    %22 = tpu.matmul %20, %21, %cst_16 {dimension_numbers = #tpu.dot_dimension_numbers<[1], [0], [0], [1], [0, 0, 1, 1], [], []>} : vector<4x512xbf16>, vector<512x512xbf16>, vector<4x512xf32> -> vector<4x512xf32>
    %c0_17 = arith.constant 0 : index
    %c0_18 = arith.constant 0 : index
    %23 = vector.load %arg7[%c0_17, %c0_18] : memref<1x512xf32, #tpu.memory_space<vmem>>, vector<1x512xf32>
    %24 = vector.broadcast %23 : vector<1x512xf32> to vector<4x512xf32>
    %25 = arith.addf %22, %24 : vector<4x512xf32>
    %cst_19 = arith.constant 2.000000e-01 : f32
    %26 = vector.broadcast %cst_19 : f32 to vector<4x512xf32>
    %27 = arith.mulf %26, %25 : vector<4x512xf32>
    %28 = arith.maximumf %25, %27 : vector<4x512xf32>
    %c0_20 = arith.constant 0 : index
    %c0_21 = arith.constant 0 : index
    %29 = vector.load %arg8[%c0_20, %c0_21] : memref<1x512xf32, #tpu.memory_space<vmem>>, vector<1x512xf32>
    %30 = vector.broadcast %29 : vector<1x512xf32> to vector<4x512xf32>
    %31 = arith.mulf %28, %30 : vector<4x512xf32>
    %cst_22 = arith.constant dense<0.000000e+00> : vector<4xf32>
    %32 = vector.multi_reduction <add>, %31, %cst_22 [1] : vector<4x512xf32> to vector<4xf32>
    %33 = vector.shape_cast %32 : vector<4xf32> to vector<4x1xf32>
    %c0_23 = arith.constant 0 : index
    %c0_24 = arith.constant 0 : index
    %34 = vector.load %arg9[%c0_23, %c0_24] : memref<1x1xf32, #tpu.memory_space<vmem>>, vector<1x1xf32>
    %35 = vector.broadcast %34 : vector<1x1xf32> to vector<4x1xf32>
    %36 = arith.addf %33, %35 : vector<4x1xf32>
    %37 = arith.negf %36 : vector<4x1xf32>
    %38 = math.exp %37 : vector<4x1xf32>
    %cst_25 = arith.constant 1.000000e+00 : f32
    %39 = vector.broadcast %cst_25 : f32 to vector<4x1xf32>
    %40 = arith.addf %39, %38 : vector<4x1xf32>
    %41 = arith.divf %39, %40 : vector<4x1xf32>
    %c0_26 = arith.constant 0 : index
    %c0_27 = arith.constant 0 : index
    %42 = vector.load %arg10[%c0_26, %c0_27] : memref<4x1xf32, #tpu.memory_space<vmem>>, vector<4x1xf32>
    tpu.vector_store %arg10[%c0_26, %c0_27], %41 {strides = array<i32>} : memref<4x1xf32, #tpu.memory_space<vmem>>, vector<4x1xf32>,
    return
  }
}

</mosaic_0001>

<llo_original>
// kernel: discriminator_forward.1
$region0: #{discriminator_forward.1}
  #allocation0 [shape = 'u32[]', space=smem, size = 0x4, offset = 0x4, fixed_abs, tag = 'smem constant byte address 0x4 - core index']
  #allocation1 [shape = 'u32[72,128]{1,0:T(1,128)}', space=vmem, size = 0x9000, scoped, tag = 'internal scratch']
  #allocation2 [shape = 'f32[1,1]{1,0:T(1,128)S(1)}', space=vmem, size = 0x200, scoped, tag = 'scoped memory for discriminator_forward.1']
  %s0 = inlined_call_operand.vmem [shape: bf16[4,256], index: 0, kind: input, shape index: {}]
  %s1 = inlined_call_operand.vmem [shape: f32[4,512], index: 1, kind: input, shape index: {}]
  %s2 = inlined_call_operand.hbm [shape: bf16[256,512], index: 2, kind: input, shape index: {}]
  %s3 = inlined_call_operand.vmem [shape: f32[1,512], index: 3, kind: input, shape index: {}]
  %s4 = inlined_call_operand.hbm [shape: bf16[512,512], index: 4, kind: input, shape index: {}]
  %s5 = inlined_call_operand.vmem [shape: f32[1,512], index: 5, kind: input, shape index: {}]
  %s6 = inlined_call_operand.hbm [shape: bf16[512,512], index: 6, kind: input, shape index: {}]
  %s7 = inlined_call_operand.vmem [shape: f32[1,512], index: 7, kind: input, shape index: {}]
  %s8 = inlined_call_operand.vmem [shape: f32[1,512], index: 8, kind: input, shape index: {}]
  %s9 = inlined_call_operand.<no memory space> [shape: f32[1,1], index: 9, kind: input, shape index: {}]
  %s10 = inlined_call_operand.vmem [shape: f32[4,1], index: 10, kind: output, shape index: {}]
  %s11 = sld [smem:[#allocation0]]
  $region62: #{discriminator_forward.1} parent=0
    _
  %s13 = ssub.s32 1, %s11
  %s14 = scalar_select 0, %s13, %s11
  %v15 = vstv %s9
  %16 = vst [vmem:[#allocation2] sm:$0x1] %v15
  $region1: #{discriminator_forward.1} parent=0
    #allocation3 [shape = 'u8[262144]{0}', space=vmem, size = 0x40000, scoped, tag = 'input window, operand 2, single buffered']
    #allocation4 [shape = 's32[1]{0}', space=sflag, size = 0x4, scoped, tag = 'scoped memory for discriminator_forward.1']
    #allocation5 [shape = 'u8[524288]{0}', space=vmem, size = 0x80000, scoped, tag = 'input window, operand 4, single buffered']
    #allocation6 [shape = 's32[1]{0}', space=sflag, size = 0x4, scoped, tag = 'scoped memory for discriminator_forward.1']
    #allocation7 [shape = 'u8[524288]{0}', space=vmem, size = 0x80000, scoped, tag = 'input window, operand 6, single buffered']
    %17 = vsyncpa [#allocation4], 0
    %18 = vsyncpa [#allocation6], 0
    // Predicated region
    $region2: #{discriminator_forward.1} parent=1 // pred_check
      _
    $region3: #{discriminator_forward.1} parent=1 // pred_check_branch
      %20 = sbr.rel (0) target = $region5
    $region4: #{discriminator_forward.1} parent=1 // pred_region
      _
    $region5: #{discriminator_forward.1} parent=1 // pred_fallthru
      _
    // Predicated region
    $region6: #{discriminator_forward.1} parent=1 // pred_check
      _
    $region7: #{discriminator_forward.1} parent=1 // pred_check_branch
      %22 = sbr.rel (0) target = $region9
    $region8: #{discriminator_forward.1} parent=1 // pred_region
      _
    $region9: #{discriminator_forward.1} parent=1 // pred_fallthru
      _
    // Predicated region
    $region10: #{discriminator_forward.1} parent=1 // pred_check
      _
    $region11: #{discriminator_forward.1} parent=1 // pred_check_branch
      %24 = sbr.rel (0) target = $region13
    $region12: #{discriminator_forward.1} parent=1 // pred_region
      %26 = vsyncadd [#allocation4], 0
      %s27 = sshll.u32 %s2, 4
      %s28 = int_to_ptr.hbm [resolvable:$true] %s27
      %s29 = sshll.u32 [#allocation3], 4
      %s30 = int_to_ptr.vmem [resolvable:$true] %s29
      %35 = dma.hbm_to_vmem [thread:$0]  %s28, 8192, %s30, [#allocation4], 256, 256, 16
    $region13: #{discriminator_forward.1} parent=1 // pred_fallthru
      _
    // Predicated region
    $region14: #{discriminator_forward.1} parent=1 // pred_check
      _
    $region15: #{discriminator_forward.1} parent=1 // pred_check_branch
      %37 = sbr.rel (0) target = $region17
    $region16: #{discriminator_forward.1} parent=1 // pred_region
      _
    $region17: #{discriminator_forward.1} parent=1 // pred_fallthru
      _
    // Predicated region
    $region18: #{discriminator_forward.1} parent=1 // pred_check
      _
    $region19: #{discriminator_forward.1} parent=1 // pred_check_branch
      %39 = sbr.rel (0) target = $region21
    $region20: #{discriminator_forward.1} parent=1 // pred_region
      %41 = vsyncadd [#allocation6], 0
      %s42 = sshll.u32 %s4, 4
      %s43 = int_to_ptr.hbm [resolvable:$true] %s42
      %s44 = sshll.u32 [#allocation5], 4
      %s45 = int_to_ptr.vmem [resolvable:$true] %s44
      %50 = dma.hbm_to_vmem [thread:$0]  %s43, 16384, %s45, [#allocation6], 256, 256, 16
    $region21: #{discriminator_forward.1} parent=1 // pred_fallthru
      _
    // Predicated region
    $region22: #{discriminator_forward.1} parent=1 // pred_check
      _
    $region23: #{discriminator_forward.1} parent=1 // pred_check_branch
      %52 = sbr.rel (0) target = $region25
    $region24: #{discriminator_forward.1} parent=1 // pred_region
      _
    $region25: #{discriminator_forward.1} parent=1 // pred_fallthru
      _
    // Predicated region
    $region26: #{discriminator_forward.1} parent=1 // pred_check
      _
    $region27: #{discriminator_forward.1} parent=1 // pred_check_branch
      %54 = sbr.rel (0) target = $region29
    $region28: #{discriminator_forward.1} parent=1 // pred_region
      %56 = vsyncadd [#allocation6], 0
      %s57 = sshll.u32 %s6, 4
      %s58 = int_to_ptr.hbm [resolvable:$true] %s57
      %s59 = sshll.u32 [#allocation7], 4
      %s60 = int_to_ptr.vmem [resolvable:$true] %s59
      %65 = dma.hbm_to_vmem [thread:$0]  %s58, 16384, %s60, [#allocation6], 256, 256, 16
    $region29: #{discriminator_forward.1} parent=1 // pred_fallthru
      _
    // Predicated region
    $region30: #{discriminator_forward.1} parent=1 // pred_check
      _
    $region31: #{discriminator_forward.1} parent=1 // pred_check_branch
      %67 = sbr.rel (0) target = $region33
    $region32: #{discriminator_forward.1} parent=1 // pred_region
      _
    $region33: #{discriminator_forward.1} parent=1 // pred_fallthru
      _
    // Predicated region
    $region34: #{discriminator_forward.1} parent=1 // pred_check
      _
    $region35: #{discriminator_forward.1} parent=1 // pred_check_branch
      %69 = sbr.rel (0) target = $region37
    $region36: #{discriminator_forward.1} parent=1 // pred_region
      _
    $region37: #{discriminator_forward.1} parent=1 // pred_fallthru
      _
    // Predicated region
    $region38: #{discriminator_forward.1} parent=1 // pred_check
      _
    $region39: #{discriminator_forward.1} parent=1 // pred_check_branch
      %71 = sbr.rel (0) target = $region41
    $region40: #{discriminator_forward.1} parent=1 // pred_region
      _
    $region41: #{discriminator_forward.1} parent=1 // pred_fallthru
      _
    // Predicated region
    $region42: #{discriminator_forward.1} parent=1 // pred_check
      _
    $region43: #{discriminator_forward.1} parent=1 // pred_check_branch
      %73 = sbr.rel (0) target = $region45
    $region44: #{discriminator_forward.1} parent=1 // pred_region
      %75 = dma.done [#allocation4], 8192
    $region45: #{discriminator_forward.1} parent=1 // pred_fallthru
      _
    // Predicated region
    $region46: #{discriminator_forward.1} parent=1 // pred_check
      _
    $region47: #{discriminator_forward.1} parent=1 // pred_check_branch
      %77 = sbr.rel (0) target = $region49
    $region48: #{discriminator_forward.1} parent=1 // pred_region
      %79 = dma.done [#allocation6], 16384
    $region49: #{discriminator_forward.1} parent=1 // pred_fallthru
      _
    // Predicated region
    $region50: #{discriminator_forward.1} parent=1 // pred_check
      _
    $region51: #{discriminator_forward.1} parent=1 // pred_check_branch
      %81 = sbr.rel (0) target = $region53
    $region52: #{discriminator_forward.1} parent=1 // pred_region
      %83 = dma.done [#allocation6], 16384
    $region53: #{discriminator_forward.1} parent=1 // pred_fallthru
      _
    %v84 = vld [vmem:[%s0] sm:$0xf]
    %v85 = vld [vmem:[#allocation3] sm:$0xff]
    %v86 = vld [vmem:[#allocation3 + $0x8] sm:$0xff]
    %v87 = vld [vmem:[#allocation3 + $0x10] sm:$0xff]
    %v88 = vld [vmem:[#allocation3 + $0x18] sm:$0xff]
    %v89 = vld [vmem:[#allocation3 + $0x20] sm:$0xff]
    %v90 = vld [vmem:[#allocation3 + $0x28] sm:$0xff]
    %v91 = vld [vmem:[#allocation3 + $0x30] sm:$0xff]
    %v92 = vld [vmem:[#allocation3 + $0x38] sm:$0xff]
    %v93 = vld [vmem:[#allocation3 + $0x40] sm:$0xff]
    %v94 = vld [vmem:[#allocation3 + $0x48] sm:$0xff]
    %v95 = vld [vmem:[#allocation3 + $0x50] sm:$0xff]
    %v96 = vld [vmem:[#allocation3 + $0x58] sm:$0xff]
    %v97 = vld [vmem:[#allocation3 + $0x60] sm:$0xff]
    %v98 = vld [vmem:[#allocation3 + $0x68] sm:$0xff]
    %v99 = vld [vmem:[#allocation3 + $0x70] sm:$0xff]
    %v100 = vld [vmem:[#allocation3 + $0x78] sm:$0xff]
    %v101 = vld [vmem:[#allocation3 + $0x80] sm:$0xff]
    %v102 = vld [vmem:[#allocation3 + $0x88] sm:$0xff]
    %v103 = vld [vmem:[#allocation3 + $0x90] sm:$0xff]
    %v104 = vld [vmem:[#allocation3 + $0x98] sm:$0xff]
    %v105 = vld [vmem:[#allocation3 + $0xa0] sm:$0xff]
    %v106 = vld [vmem:[#allocation3 + $0xa8] sm:$0xff]
    %v107 = vld [vmem:[#allocation3 + $0xb0] sm:$0xff]
    %v108 = vld [vmem:[#allocation3 + $0xb8] sm:$0xff]
    %v109 = vld [vmem:[#allocation3 + $0xc0] sm:$0xff]
    %v110 = vld [vmem:[#allocation3 + $0xc8] sm:$0xff]
    %v111 = vld [vmem:[#allocation3 + $0xd0] sm:$0xff]
    %v112 = vld [vmem:[#allocation3 + $0xd8] sm:$0xff]
    %v113 = vld [vmem:[#allocation3 + $0xe0] sm:$0xff]
    %v114 = vld [vmem:[#allocation3 + $0xe8] sm:$0xff]
    %v115 = vld [vmem:[#allocation3 + $0xf0] sm:$0xff]
    %v116 = vld [vmem:[#allocation3 + $0xf8] sm:$0xff]
    %v117 = vld [vmem:[#allocation3 + $0x100] sm:$0xff]
    %v118 = vld [vmem:[#allocation3 + $0x108] sm:$0xff]
    %v119 = vld [vmem:[#allocation3 + $0x110] sm:$0xff]
    %v120 = vld [vmem:[#allocation3 + $0x118] sm:$0xff]
    %v121 = vld [vmem:[#allocation3 + $0x120] sm:$0xff]
    %v122 = vld [vmem:[#allocation3 + $0x128] sm:$0xff]
    %v123 = vld [vmem:[#allocation3 + $0x130] sm:$0xff]
    %v124 = vld [vmem:[#allocation3 + $0x138] sm:$0xff]
    %v125 = vld [vmem:[#allocation3 + $0x140] sm:$0xff]
    %v126 = vld [vmem:[#allocation3 + $0x148] sm:$0xff]
    %v127 = vld [vmem:[#allocation3 + $0x150] sm:$0xff]
    %v128 = vld [vmem:[#allocation3 + $0x158] sm:$0xff]
    %v129 = vld [vmem:[#allocation3 + $0x160] sm:$0xff]
    %v130 = vld [vmem:[#allocation3 + $0x168] sm:$0xff]
    %v131 = vld [vmem:[#allocation3 + $0x170] sm:$0xff]
    %v132 = vld [vmem:[#allocation3 + $0x178] sm:$0xff]
    %v133 = vld [vmem:[#allocation3 + $0x180] sm:$0xff]
    %v134 = vld [vmem:[#allocation3 + $0x188] sm:$0xff]
    %v135 = vld [vmem:[#allocation3 + $0x190] sm:$0xff]
    %v136 = vld [vmem:[#allocation3 + $0x198] sm:$0xff]
    %v137 = vld [vmem:[#allocation3 + $0x1a0] sm:$0xff]
    %v138 = vld [vmem:[#allocation3 + $0x1a8] sm:$0xff]
    %v139 = vld [vmem:[#allocation3 + $0x1b0] sm:$0xff]
    %v140 = vld [vmem:[#allocation3 + $0x1b8] sm:$0xff]
    %v141 = vld [vmem:[#allocation3 + $0x1c0] sm:$0xff]
    %v142 = vld [vmem:[#allocation3 + $0x1c8] sm:$0xff]
    %v143 = vld [vmem:[#allocation3 + $0x1d0] sm:$0xff]
    %v144 = vld [vmem:[#allocation3 + $0x1d8] sm:$0xff]
    %v145 = vld [vmem:[#allocation3 + $0x1e0] sm:$0xff]
    %v146 = vld [vmem:[#allocation3 + $0x1e8] sm:$0xff]
    %v147 = vld [vmem:[#allocation3 + $0x1f0] sm:$0xff]
    %v148 = vld [vmem:[#allocation3 + $0x1f8] sm:$0xff]
    %v149 = vld [vmem:[%s1] sm:$0xff]
    %v150 = vld [vmem:[%s1 + $0x8] sm:$0xff]
    %152 = vst [vmem:[#allocation1] ss:$4 sm:$0xff] %v84
    %v153 = vld.sshfl [vmem:[#allocation1] sm:$0xff pattern:$0x73625140]
    %v154 = vld.sshfl [vmem:[#allocation1 + $0x8] sm:$0xff pattern:$0x73625140]
    %v221 = vunpack.c.l.b16 %v85
    %v222 = vunpack.c.h.b16 %v85
    %v223 = vunpack.c.l.b16 %v86
    %v224 = vunpack.c.h.b16 %v86
    %v225 = vunpack.c.l.b16 %v87
    %v226 = vunpack.c.h.b16 %v87
    %v227 = vunpack.c.l.b16 %v88
    %v228 = vunpack.c.h.b16 %v88
    %v229 = vunpack.c.l.b16 %v89
    %v230 = vunpack.c.h.b16 %v89
    %v231 = vunpack.c.l.b16 %v90
    %v232 = vunpack.c.h.b16 %v90
    %v233 = vunpack.c.l.b16 %v91
    %v234 = vunpack.c.h.b16 %v91
    %v235 = vunpack.c.l.b16 %v92
    %v236 = vunpack.c.h.b16 %v92
    %v237 = vunpack.c.l.b16 %v93
    %v238 = vunpack.c.h.b16 %v93
    %v239 = vunpack.c.l.b16 %v94
    %v240 = vunpack.c.h.b16 %v94
    %v241 = vunpack.c.l.b16 %v95
    %v242 = vunpack.c.h.b16 %v95
    %v243 = vunpack.c.l.b16 %v96
    %v244 = vunpack.c.h.b16 %v96
    %v245 = vunpack.c.l.b16 %v97
    %v246 = vunpack.c.h.b16 %v97
    %v247 = vunpack.c.l.b16 %v98
    %v248 = vunpack.c.h.b16 %v98
    %v249 = vunpack.c.l.b16 %v99
    %v250 = vunpack.c.h.b16 %v99
    %v251 = vunpack.c.l.b16 %v100
    %v252 = vunpack.c.h.b16 %v100
    %v253 = vunpack.c.l.b16 %v101
    %v254 = vunpack.c.h.b16 %v101
    %v255 = vunpack.c.l.b16 %v102
    %v256 = vunpack.c.h.b16 %v102
    %v257 = vunpack.c.l.b16 %v103
    %v258 = vunpack.c.h.b16 %v103
    %v259 = vunpack.c.l.b16 %v104
    %v260 = vunpack.c.h.b16 %v104
    %v261 = vunpack.c.l.b16 %v105
    %v262 = vunpack.c.h.b16 %v105
    %v263 = vunpack.c.l.b16 %v106
    %v264 = vunpack.c.h.b16 %v106
    %v265 = vunpack.c.l.b16 %v107
    %v266 = vunpack.c.h.b16 %v107
    %v267 = vunpack.c.l.b16 %v108
    %v268 = vunpack.c.h.b16 %v108
    %v269 = vunpack.c.l.b16 %v109
    %v270 = vunpack.c.h.b16 %v109
    %v271 = vunpack.c.l.b16 %v110
    %v272 = vunpack.c.h.b16 %v110
    %v273 = vunpack.c.l.b16 %v111
    %v274 = vunpack.c.h.b16 %v111
    %v275 = vunpack.c.l.b16 %v112
    %v276 = vunpack.c.h.b16 %v112
    %v277 = vunpack.c.l.b16 %v113
    %v278 = vunpack.c.h.b16 %v113
    %v279 = vunpack.c.l.b16 %v114
    %v280 = vunpack.c.h.b16 %v114
    %v281 = vunpack.c.l.b16 %v115
    %v282 = vunpack.c.h.b16 %v115
    %v283 = vunpack.c.l.b16 %v116
    %v284 = vunpack.c.h.b16 %v116
    %v285 = vunpack.c.l.b16 %v117
    %v286 = vunpack.c.h.b16 %v117
    %v287 = vunpack.c.l.b16 %v118
    %v288 = vunpack.c.h.b16 %v118
    %v289 = vunpack.c.l.b16 %v119
    %v290 = vunpack.c.h.b16 %v119
    %v291 = vunpack.c.l.b16 %v120
    %v292 = vunpack.c.h.b16 %v120
    %v293 = vunpack.c.l.b16 %v121
    %v294 = vunpack.c.h.b16 %v121
    %v295 = vunpack.c.l.b16 %v122
    %v296 = vunpack.c.h.b16 %v122
    %v297 = vunpack.c.l.b16 %v123
    %v298 = vunpack.c.h.b16 %v123
    %v299 = vunpack.c.l.b16 %v124
    %v300 = vunpack.c.h.b16 %v124
    %v301 = vunpack.c.l.b16 %v125
    %v302 = vunpack.c.h.b16 %v125
    %v303 = vunpack.c.l.b16 %v126
    %v304 = vunpack.c.h.b16 %v126
    %v305 = vunpack.c.l.b16 %v127
    %v306 = vunpack.c.h.b16 %v127
    %v307 = vunpack.c.l.b16 %v128
    %v308 = vunpack.c.h.b16 %v128
    %v309 = vunpack.c.l.b16 %v129
    %v310 = vunpack.c.h.b16 %v129
    %v311 = vunpack.c.l.b16 %v130
    %v312 = vunpack.c.h.b16 %v130
    %v313 = vunpack.c.l.b16 %v131
    %v314 = vunpack.c.h.b16 %v131
    %v315 = vunpack.c.l.b16 %v132
    %v316 = vunpack.c.h.b16 %v132
    %v317 = vunpack.c.l.b16 %v133
    %v318 = vunpack.c.h.b16 %v133
    %v319 = vunpack.c.l.b16 %v134
    %v320 = vunpack.c.h.b16 %v134
    %v321 = vunpack.c.l.b16 %v135
    %v322 = vunpack.c.h.b16 %v135
    %v323 = vunpack.c.l.b16 %v136
    %v324 = vunpack.c.h.b16 %v136
    %v325 = vunpack.c.l.b16 %v137
    %v326 = vunpack.c.h.b16 %v137
    %v327 = vunpack.c.l.b16 %v138
    %v328 = vunpack.c.h.b16 %v138
    %v329 = vunpack.c.l.b16 %v139
    %v330 = vunpack.c.h.b16 %v139
    %v331 = vunpack.c.l.b16 %v140
    %v332 = vunpack.c.h.b16 %v140
    %v333 = vunpack.c.l.b16 %v141
    %v334 = vunpack.c.h.b16 %v141
    %v335 = vunpack.c.l.b16 %v142
    %v336 = vunpack.c.h.b16 %v142
    %v337 = vunpack.c.l.b16 %v143
    %v338 = vunpack.c.h.b16 %v143
    %v339 = vunpack.c.l.b16 %v144
    %v340 = vunpack.c.h.b16 %v144
    %v341 = vunpack.c.l.b16 %v145
    %v342 = vunpack.c.h.b16 %v145
    %v343 = vunpack.c.l.b16 %v146
    %v344 = vunpack.c.h.b16 %v146
    %v345 = vunpack.c.l.b16 %v147
    %v346 = vunpack.c.h.b16 %v147
    %v347 = vunpack.c.l.b16 %v148
    %v348 = vunpack.c.h.b16 %v148
    %v349 = vpack.c.b16 %v225, %v221
    %v350 = vpack.c.b16 %v226, %v222
    %v351 = vpack.c.b16 %v227, %v223
    %v352 = vpack.c.b16 %v228, %v224
    %v353 = vpack.c.b16 %v233, %v229
    %v354 = vpack.c.b16 %v234, %v230
    %v355 = vpack.c.b16 %v235, %v231
    %v356 = vpack.c.b16 %v236, %v232
    %v357 = vpack.c.b16 %v241, %v237
    %v358 = vpack.c.b16 %v242, %v238
    %v359 = vpack.c.b16 %v243, %v239
    %v360 = vpack.c.b16 %v244, %v240
    %v361 = vpack.c.b16 %v249, %v245
    %v362 = vpack.c.b16 %v250, %v246
    %v363 = vpack.c.b16 %v251, %v247
    %v364 = vpack.c.b16 %v252, %v248
    %v365 = vpack.c.b16 %v257, %v253
    %v366 = vpack.c.b16 %v258, %v254
    %v367 = vpack.c.b16 %v259, %v255
    %v368 = vpack.c.b16 %v260, %v256
    %v369 = vpack.c.b16 %v265, %v261
    %v370 = vpack.c.b16 %v266, %v262
    %v371 = vpack.c.b16 %v267, %v263
    %v372 = vpack.c.b16 %v268, %v264
    %v373 = vpack.c.b16 %v273, %v269
    %v374 = vpack.c.b16 %v274, %v270
    %v375 = vpack.c.b16 %v275, %v271
    %v376 = vpack.c.b16 %v276, %v272
    %v377 = vpack.c.b16 %v281, %v277
    %v378 = vpack.c.b16 %v282, %v278
    %v379 = vpack.c.b16 %v283, %v279
    %v380 = vpack.c.b16 %v284, %v280
    %v381 = vpack.c.b16 %v289, %v285
    %v382 = vpack.c.b16 %v290, %v286
    %v383 = vpack.c.b16 %v291, %v287
    %v384 = vpack.c.b16 %v292, %v288
    %v385 = vpack.c.b16 %v297, %v293
    %v386 = vpack.c.b16 %v298, %v294
    %v387 = vpack.c.b16 %v299, %v295
    %v388 = vpack.c.b16 %v300, %v296
    %v389 = vpack.c.b16 %v305, %v301
    %v390 = vpack.c.b16 %v306, %v302
    %v391 = vpack.c.b16 %v307, %v303
    %v392 = vpack.c.b16 %v308, %v304
    %v393 = vpack.c.b16 %v313, %v309
    %v394 = vpack.c.b16 %v314, %v310
    %v395 = vpack.c.b16 %v315, %v311
    %v396 = vpack.c.b16 %v316, %v312
    %v397 = vpack.c.b16 %v321, %v317
    %v398 = vpack.c.b16 %v322, %v318
    %v399 = vpack.c.b16 %v323, %v319
    %v400 = vpack.c.b16 %v324, %v320
    %v401 = vpack.c.b16 %v329, %v325
    %v402 = vpack.c.b16 %v330, %v326
    %v403 = vpack.c.b16 %v331, %v327
    %v404 = vpack.c.b16 %v332, %v328
    %v405 = vpack.c.b16 %v337, %v333
    %v406 = vpack.c.b16 %v338, %v334
    %v407 = vpack.c.b16 %v339, %v335
    %v408 = vpack.c.b16 %v340, %v336
    %v409 = vpack.c.b16 %v345, %v341
    %v410 = vpack.c.b16 %v346, %v342
    %v411 = vpack.c.b16 %v347, %v343
    %v412 = vpack.c.b16 %v348, %v344
    %479 = vst [vmem:[#allocation1] ss:$2 sm:$0xff] %v149
    %s480 = scalar_lea.vmem [#allocation1], 16
    %481 = vst [vmem:[%s480] ss:$2 sm:$0xff] %v150
    %v482 = vld.sshfl [vmem:[#allocation1] sm:$0xff pattern:$0x75316420]
    %v483 = vld.sshfl [vmem:[#allocation1 + $0x8] sm:$0xff pattern:$0x75316420]
    %v484 = vld.sshfl [vmem:[#allocation1 + $0x10] sm:$0xff pattern:$0x75316420]
    %v485 = vld.sshfl [vmem:[#allocation1 + $0x18] sm:$0xff pattern:$0x75316420]
    %490 = vmatpush.bf16.msra.mxu0 %v377
    %491 = vmatpush.bf16.msra.mxu0 %v373
    %492 = vmatpush.bf16.msra.mxu0 %v369
    %493 = vmatpush.bf16.msra.mxu0 %v365
    %494 = vmatpush.bf16.msra.mxu0 %v361
    %495 = vmatpush.bf16.msra.mxu0 %v357
    %496 = vmatpush.bf16.msra.mxu0 %v353
    %497 = vmatpush.bf16.msra.mxu0 %v349
    %498 = vmatmul.bf16.gmra.mxu0 %v153
    %v499 = vpop.f32.mrf.mxu0
    %v500 = vadd.f32 %v482, %v499
    %v501 = vpop.f32.mrf.mxu0
    %502 = vdwg.mxu0
    %503 = vmatpush.bf16.msra.mxu0 %v409
    %504 = vmatpush.bf16.msra.mxu0 %v405
    %505 = vmatpush.bf16.msra.mxu0 %v401
    %506 = vmatpush.bf16.msra.mxu0 %v397
    %507 = vmatpush.bf16.msra.mxu0 %v393
    %508 = vmatpush.bf16.msra.mxu0 %v389
    %509 = vmatpush.bf16.msra.mxu0 %v385
    %510 = vmatpush.bf16.msra.mxu0 %v381
    %511 = vmatmul.bf16.gmra.mxu0 %v154
    %v512 = vpop.f32.mrf.mxu0
    %v513 = vadd.f32 %v500, %v512
    %v514 = vpop.f32.mrf.mxu0
    %515 = vdwg.mxu0
    %516 = vmatpush.bf16.msra.mxu0 %v378
    %517 = vmatpush.bf16.msra.mxu0 %v374
    %518 = vmatpush.bf16.msra.mxu0 %v370
    %519 = vmatpush.bf16.msra.mxu0 %v366
    %520 = vmatpush.bf16.msra.mxu0 %v362
    %521 = vmatpush.bf16.msra.mxu0 %v358
    %522 = vmatpush.bf16.msra.mxu0 %v354
    %523 = vmatpush.bf16.msra.mxu0 %v350
    %524 = vmatmul.bf16.gmra.mxu0 %v153
    %v525 = vpop.f32.mrf.mxu0
    %v526 = vadd.f32 %v483, %v525
    %v527 = vpop.f32.mrf.mxu0
    %528 = vdwg.mxu0
    %529 = vmatpush.bf16.msra.mxu0 %v410
    %530 = vmatpush.bf16.msra.mxu0 %v406
    %531 = vmatpush.bf16.msra.mxu0 %v402
    %532 = vmatpush.bf16.msra.mxu0 %v398
    %533 = vmatpush.bf16.msra.mxu0 %v394
    %534 = vmatpush.bf16.msra.mxu0 %v390
    %535 = vmatpush.bf16.msra.mxu0 %v386
    %536 = vmatpush.bf16.msra.mxu0 %v382
    %537 = vmatmul.bf16.gmra.mxu0 %v154
    %v538 = vpop.f32.mrf.mxu0
    %v539 = vadd.f32 %v526, %v538
    %v540 = vpop.f32.mrf.mxu0
    %541 = vdwg.mxu0
    %542 = vmatpush.bf16.msra.mxu0 %v379
    %543 = vmatpush.bf16.msra.mxu0 %v375
    %544 = vmatpush.bf16.msra.mxu0 %v371
    %545 = vmatpush.bf16.msra.mxu0 %v367
    %546 = vmatpush.bf16.msra.mxu0 %v363
    %547 = vmatpush.bf16.msra.mxu0 %v359
    %548 = vmatpush.bf16.msra.mxu0 %v355
    %549 = vmatpush.bf16.msra.mxu0 %v351
    %550 = vmatmul.bf16.gmra.mxu0 %v153
    %v551 = vpop.f32.mrf.mxu0
    %v552 = vadd.f32 %v484, %v551
    %v553 = vpop.f32.mrf.mxu0
    %554 = vdwg.mxu0
    %555 = vmatpush.bf16.msra.mxu0 %v411
    %556 = vmatpush.bf16.msra.mxu0 %v407
    %557 = vmatpush.bf16.msra.mxu0 %v403
    %558 = vmatpush.bf16.msra.mxu0 %v399
    %559 = vmatpush.bf16.msra.mxu0 %v395
    %560 = vmatpush.bf16.msra.mxu0 %v391
    %561 = vmatpush.bf16.msra.mxu0 %v387
    %562 = vmatpush.bf16.msra.mxu0 %v383
    %563 = vmatmul.bf16.gmra.mxu0 %v154
    %v564 = vpop.f32.mrf.mxu0
    %v565 = vadd.f32 %v552, %v564
    %v566 = vpop.f32.mrf.mxu0
    %567 = vdwg.mxu0
    %568 = vmatpush.bf16.msra.mxu0 %v380
    %569 = vmatpush.bf16.msra.mxu0 %v376
    %570 = vmatpush.bf16.msra.mxu0 %v372
    %571 = vmatpush.bf16.msra.mxu0 %v368
    %572 = vmatpush.bf16.msra.mxu0 %v364
    %573 = vmatpush.bf16.msra.mxu0 %v360
    %574 = vmatpush.bf16.msra.mxu0 %v356
    %575 = vmatpush.bf16.msra.mxu0 %v352
    %576 = vmatmul.bf16.gmra.mxu0 %v153
    %v577 = vpop.f32.mrf.mxu0
    %v578 = vadd.f32 %v485, %v577
    %v579 = vpop.f32.mrf.mxu0
    %580 = vdwg.mxu0
    %581 = vmatpush.bf16.msra.mxu0 %v412
    %582 = vmatpush.bf16.msra.mxu0 %v408
    %583 = vmatpush.bf16.msra.mxu0 %v404
    %584 = vmatpush.bf16.msra.mxu0 %v400
    %585 = vmatpush.bf16.msra.mxu0 %v396
    %586 = vmatpush.bf16.msra.mxu0 %v392
    %587 = vmatpush.bf16.msra.mxu0 %v388
    %588 = vmatpush.bf16.msra.mxu0 %v384
    %589 = vmatmul.bf16.gmra.mxu0 %v154
    %v590 = vpop.f32.mrf.mxu0
    %v591 = vadd.f32 %v578, %v590
    %v592 = vpop.f32.mrf.mxu0
    %593 = vdwg.mxu0
    %v594 = vld [vmem:[%s3] sm:$0xf]
    %v596 = vperm.slane %v594, 0
    %v597 = vperm.slane %v594, 1
    %v598 = vperm.slane %v594, 2
    %v599 = vperm.slane %v594, 3
    %v604 = vadd.f32 %v513, %v596
    %v605 = vadd.f32 %v539, %v597
    %v606 = vadd.f32 %v565, %v598
    %v607 = vadd.f32 %v591, %v599
    %v608 = vmul.f32 %v604, 0.2
    %v609 = vmul.f32 %v605, 0.2
    %v610 = vmul.f32 %v606, 0.2
    %v611 = vmul.f32 %v607, 0.2
    %v612 = vmax.f32 %v604, %v608
    %v613 = vmax.f32 %v605, %v609
    %v614 = vmax.f32 %v606, %v610
    %v615 = vmax.f32 %v607, %v611
    %v616 = vpack.c.bf16 %v612, %v612
    %v617 = vpack.c.bf16 %v613, %v613
    %v618 = vpack.c.bf16 %v614, %v614
    %v619 = vpack.c.bf16 %v615, %v615
    %v620 = vld [vmem:[#allocation5] sm:$0xff]
    %v621 = vld [vmem:[#allocation5 + $0x8] sm:$0xff]
    %v622 = vld [vmem:[#allocation5 + $0x10] sm:$0xff]
    %v623 = vld [vmem:[#allocation5 + $0x18] sm:$0xff]
    %v624 = vld [vmem:[#allocation5 + $0x20] sm:$0xff]
    %v625 = vld [vmem:[#allocation5 + $0x28] sm:$0xff]
    %v626 = vld [vmem:[#allocation5 + $0x30] sm:$0xff]
    %v627 = vld [vmem:[#allocation5 + $0x38] sm:$0xff]
    %v628 = vld [vmem:[#allocation5 + $0x40] sm:$0xff]
    %v629 = vld [vmem:[#allocation5 + $0x48] sm:$0xff]
    %v630 = vld [vmem:[#allocation5 + $0x50] sm:$0xff]
    %v631 = vld [vmem:[#allocation5 + $0x58] sm:$0xff]
    %v632 = vld [vmem:[#allocation5 + $0x60] sm:$0xff]
    %v633 = vld [vmem:[#allocation5 + $0x68] sm:$0xff]
    %v634 = vld [vmem:[#allocation5 + $0x70] sm:$0xff]
    %v635 = vld [vmem:[#allocation5 + $0x78] sm:$0xff]
    %v636 = vld [vmem:[#allocation5 + $0x80] sm:$0xff]
    %v637 = vld [vmem:[#allocation5 + $0x88] sm:$0xff]
    %v638 = vld [vmem:[#allocation5 + $0x90] sm:$0xff]
    %v639 = vld [vmem:[#allocation5 + $0x98] sm:$0xff]
    %v640 = vld [vmem:[#allocation5 + $0xa0] sm:$0xff]
    %v641 = vld [vmem:[#allocation5 + $0xa8] sm:$0xff]
    %v642 = vld [vmem:[#allocation5 + $0xb0] sm:$0xff]
    %v643 = vld [vmem:[#allocation5 + $0xb8] sm:$0xff]
    %v644 = vld [vmem:[#allocation5 + $0xc0] sm:$0xff]
    %v645 = vld [vmem:[#allocation5 + $0xc8] sm:$0xff]
    %v646 = vld [vmem:[#allocation5 + $0xd0] sm:$0xff]
    %v647 = vld [vmem:[#allocation5 + $0xd8] sm:$0xff]
    %v648 = vld [vmem:[#allocation5 + $0xe0] sm:$0xff]
    %v649 = vld [vmem:[#allocation5 + $0xe8] sm:$0xff]
    %v650 = vld [vmem:[#allocation5 + $0xf0] sm:$0xff]
    %v651 = vld [vmem:[#allocation5 + $0xf8] sm:$0xff]
    %v652 = vld [vmem:[#allocation5 + $0x100] sm:$0xff]
    %v653 = vld [vmem:[#allocation5 + $0x108] sm:$0xff]
    %v654 = vld [vmem:[#allocation5 + $0x110] sm:$0xff]
    %v655 = vld [vmem:[#allocation5 + $0x118] sm:$0xff]
    %v656 = vld [vmem:[#allocation5 + $0x120] sm:$0xff]
    %v657 = vld [vmem:[#allocation5 + $0x128] sm:$0xff]
    %v658 = vld [vmem:[#allocation5 + $0x130] sm:$0xff]
    %v659 = vld [vmem:[#allocation5 + $0x138] sm:$0xff]
    %v660 = vld [vmem:[#allocation5 + $0x140] sm:$0xff]
    %v661 = vld [vmem:[#allocation5 + $0x148] sm:$0xff]
    %v662 = vld [vmem:[#allocation5 + $0x150] sm:$0xff]
    %v663 = vld [vmem:[#allocation5 + $0x158] sm:$0xff]
    %v664 = vld [vmem:[#allocation5 + $0x160] sm:$0xff]
    %v665 = vld [vmem:[#allocation5 + $0x168] sm:$0xff]
    %v666 = vld [vmem:[#allocation5 + $0x170] sm:$0xff]
    %v667 = vld [vmem:[#allocation5 + $0x178] sm:$0xff]
    %v668 = vld [vmem:[#allocation5 + $0x180] sm:$0xff]
    %v669 = vld [vmem:[#allocation5 + $0x188] sm:$0xff]
    %v670 = vld [vmem:[#allocation5 + $0x190] sm:$0xff]
    %v671 = vld [vmem:[#allocation5 + $0x198] sm:$0xff]
    %v672 = vld [vmem:[#allocation5 + $0x1a0] sm:$0xff]
    %v673 = vld [vmem:[#allocation5 + $0x1a8] sm:$0xff]
    %v674 = vld [vmem:[#allocation5 + $0x1b0] sm:$0xff]
    %v675 = vld [vmem:[#allocation5 + $0x1b8] sm:$0xff]
    %v676 = vld [vmem:[#allocation5 + $0x1c0] sm:$0xff]
    %v677 = vld [vmem:[#allocation5 + $0x1c8] sm:$0xff]
    %v678 = vld [vmem:[#allocation5 + $0x1d0] sm:$0xff]
    %v679 = vld [vmem:[#allocation5 + $0x1d8] sm:$0xff]
    %v680 = vld [vmem:[#allocation5 + $0x1e0] sm:$0xff]
    %v681 = vld [vmem:[#allocation5 + $0x1e8] sm:$0xff]
    %v682 = vld [vmem:[#allocation5 + $0x1f0] sm:$0xff]
    %v683 = vld [vmem:[#allocation5 + $0x1f8] sm:$0xff]
    %v684 = vld [vmem:[#allocation5 + $0x200] sm:$0xff]
    %v685 = vld [vmem:[#allocation5 + $0x208] sm:$0xff]
    %v686 = vld [vmem:[#allocation5 + $0x210] sm:$0xff]
    %v687 = vld [vmem:[#allocation5 + $0x218] sm:$0xff]
    %v688 = vld [vmem:[#allocation5 + $0x220] sm:$0xff]
    %v689 = vld [vmem:[#allocation5 + $0x228] sm:$0xff]
    %v690 = vld [vmem:[#allocation5 + $0x230] sm:$0xff]
    %v691 = vld [vmem:[#allocation5 + $0x238] sm:$0xff]
    %v692 = vld [vmem:[#allocation5 + $0x240] sm:$0xff]
    %v693 = vld [vmem:[#allocation5 + $0x248] sm:$0xff]
    %v694 = vld [vmem:[#allocation5 + $0x250] sm:$0xff]
    %v695 = vld [vmem:[#allocation5 + $0x258] sm:$0xff]
    %v696 = vld [vmem:[#allocation5 + $0x260] sm:$0xff]
    %v697 = vld [vmem:[#allocation5 + $0x268] sm:$0xff]
    %v698 = vld [vmem:[#allocation5 + $0x270] sm:$0xff]
    %v699 = vld [vmem:[#allocation5 + $0x278] sm:$0xff]
    %v700 = vld [vmem:[#allocation5 + $0x280] sm:$0xff]
    %v701 = vld [vmem:[#allocation5 + $0x288] sm:$0xff]
    %v702 = vld [vmem:[#allocation5 + $0x290] sm:$0xff]
    %v703 = vld [vmem:[#allocation5 + $0x298] sm:$0xff]
    %v704 = vld [vmem:[#allocation5 + $0x2a0] sm:$0xff]
    %v705 = vld [vmem:[#allocation5 + $0x2a8] sm:$0xff]
    %v706 = vld [vmem:[#allocation5 + $0x2b0] sm:$0xff]
    %v707 = vld [vmem:[#allocation5 + $0x2b8] sm:$0xff]
    %v708 = vld [vmem:[#allocation5 + $0x2c0] sm:$0xff]
    %v709 = vld [vmem:[#allocation5 + $0x2c8] sm:$0xff]
    %v710 = vld [vmem:[#allocation5 + $0x2d0] sm:$0xff]
    %v711 = vld [vmem:[#allocation5 + $0x2d8] sm:$0xff]
    %v712 = vld [vmem:[#allocation5 + $0x2e0] sm:$0xff]
    %v713 = vld [vmem:[#allocation5 + $0x2e8] sm:$0xff]
    %v714 = vld [vmem:[#allocation5 + $0x2f0] sm:$0xff]
    %v715 = vld [vmem:[#allocation5 + $0x2f8] sm:$0xff]
    %v716 = vld [vmem:[#allocation5 + $0x300] sm:$0xff]
    %v717 = vld [vmem:[#allocation5 + $0x308] sm:$0xff]
    %v718 = vld [vmem:[#allocation5 + $0x310] sm:$0xff]
    %v719 = vld [vmem:[#allocation5 + $0x318] sm:$0xff]
    %v720 = vld [vmem:[#allocation5 + $0x320] sm:$0xff]
    %v721 = vld [vmem:[#allocation5 + $0x328] sm:$0xff]
    %v722 = vld [vmem:[#allocation5 + $0x330] sm:$0xff]
    %v723 = vld [vmem:[#allocation5 + $0x338] sm:$0xff]
    %v724 = vld [vmem:[#allocation5 + $0x340] sm:$0xff]
    %v725 = vld [vmem:[#allocation5 + $0x348] sm:$0xff]
    %v726 = vld [vmem:[#allocation5 + $0x350] sm:$0xff]
    %v727 = vld [vmem:[#allocation5 + $0x358] sm:$0xff]
    %v728 = vld [vmem:[#allocation5 + $0x360] sm:$0xff]
    %v729 = vld [vmem:[#allocation5 + $0x368] sm:$0xff]
    %v730 = vld [vmem:[#allocation5 + $0x370] sm:$0xff]
    %v731 = vld [vmem:[#allocation5 + $0x378] sm:$0xff]
    %v732 = vld [vmem:[#allocation5 + $0x380] sm:$0xff]
    %v733 = vld [vmem:[#allocation5 + $0x388] sm:$0xff]
    %v734 = vld [vmem:[#allocation5 + $0x390] sm:$0xff]
    %v735 = vld [vmem:[#allocation5 + $0x398] sm:$0xff]
    %v736 = vld [vmem:[#allocation5 + $0x3a0] sm:$0xff]
    %v737 = vld [vmem:[#allocation5 + $0x3a8] sm:$0xff]
    %v738 = vld [vmem:[#allocation5 + $0x3b0] sm:$0xff]
    %v739 = vld [vmem:[#allocation5 + $0x3b8] sm:$0xff]
    %v740 = vld [vmem:[#allocation5 + $0x3c0] sm:$0xff]
    %v741 = vld [vmem:[#allocation5 + $0x3c8] sm:$0xff]
    %v742 = vld [vmem:[#allocation5 + $0x3d0] sm:$0xff]
    %v743 = vld [vmem:[#allocation5 + $0x3d8] sm:$0xff]
    %v744 = vld [vmem:[#allocation5 + $0x3e0] sm:$0xff]
    %v745 = vld [vmem:[#allocation5 + $0x3e8] sm:$0xff]
    %v746 = vld [vmem:[#allocation5 + $0x3f0] sm:$0xff]
    %v747 = vld [vmem:[#allocation5 + $0x3f8] sm:$0xff]
    %v748 = vld [vmem:[%s5] sm:$0xf]
    %v750 = vperm.slane %v748, 0
    %v751 = vperm.slane %v748, 1
    %v752 = vperm.slane %v748, 2
    %v753 = vperm.slane %v748, 3
    %v886 = vunpack.c.l.b16 %v620
    %v887 = vunpack.c.h.b16 %v620
    %v888 = vunpack.c.l.b16 %v621
    %v889 = vunpack.c.h.b16 %v621
    %v890 = vunpack.c.l.b16 %v622
    %v891 = vunpack.c.h.b16 %v622
    %v892 = vunpack.c.l.b16 %v623
    %v893 = vunpack.c.h.b16 %v623
    %v894 = vunpack.c.l.b16 %v624
    %v895 = vunpack.c.h.b16 %v624
    %v896 = vunpack.c.l.b16 %v625
    %v897 = vunpack.c.h.b16 %v625
    %v898 = vunpack.c.l.b16 %v626
    %v899 = vunpack.c.h.b16 %v626
    %v900 = vunpack.c.l.b16 %v627
    %v901 = vunpack.c.h.b16 %v627
    %v902 = vunpack.c.l.b16 %v628
    %v903 = vunpack.c.h.b16 %v628
    %v904 = vunpack.c.l.b16 %v629
    %v905 = vunpack.c.h.b16 %v629
    %v906 = vunpack.c.l.b16 %v630
    %v907 = vunpack.c.h.b16 %v630
    %v908 = vunpack.c.l.b16 %v631
    %v909 = vunpack.c.h.b16 %v631
    %v910 = vunpack.c.l.b16 %v632
    %v911 = vunpack.c.h.b16 %v632
    %v912 = vunpack.c.l.b16 %v633
    %v913 = vunpack.c.h.b16 %v633
    %v914 = vunpack.c.l.b16 %v634
    %v915 = vunpack.c.h.b16 %v634
    %v916 = vunpack.c.l.b16 %v635
    %v917 = vunpack.c.h.b16 %v635
    %v918 = vunpack.c.l.b16 %v636
    %v919 = vunpack.c.h.b16 %v636
    %v920 = vunpack.c.l.b16 %v637
    %v921 = vunpack.c.h.b16 %v637
    %v922 = vunpack.c.l.b16 %v638
    %v923 = vunpack.c.h.b16 %v638
    %v924 = vunpack.c.l.b16 %v639
    %v925 = vunpack.c.h.b16 %v639
    %v926 = vunpack.c.l.b16 %v640
    %v927 = vunpack.c.h.b16 %v640
    %v928 = vunpack.c.l.b16 %v641
    %v929 = vunpack.c.h.b16 %v641
    %v930 = vunpack.c.l.b16 %v642
    %v931 = vunpack.c.h.b16 %v642
    %v932 = vunpack.c.l.b16 %v643
    %v933 = vunpack.c.h.b16 %v643
    %v934 = vunpack.c.l.b16 %v644
    %v935 = vunpack.c.h.b16 %v644
    %v936 = vunpack.c.l.b16 %v645
    %v937 = vunpack.c.h.b16 %v645
    %v938 = vunpack.c.l.b16 %v646
    %v939 = vunpack.c.h.b16 %v646
    %v940 = vunpack.c.l.b16 %v647
    %v941 = vunpack.c.h.b16 %v647
    %v942 = vunpack.c.l.b16 %v648
    %v943 = vunpack.c.h.b16 %v648
    %v944 = vunpack.c.l.b16 %v649
    %v945 = vunpack.c.h.b16 %v649
    %v946 = vunpack.c.l.b16 %v650
    %v947 = vunpack.c.h.b16 %v650
    %v948 = vunpack.c.l.b16 %v651
    %v949 = vunpack.c.h.b16 %v651
    %v950 = vunpack.c.l.b16 %v652
    %v951 = vunpack.c.h.b16 %v652
    %v952 = vunpack.c.l.b16 %v653
    %v953 = vunpack.c.h.b16 %v653
    %v954 = vunpack.c.l.b16 %v654
    %v955 = vunpack.c.h.b16 %v654
    %v956 = vunpack.c.l.b16 %v655
    %v957 = vunpack.c.h.b16 %v655
    %v958 = vunpack.c.l.b16 %v656
    %v959 = vunpack.c.h.b16 %v656
    %v960 = vunpack.c.l.b16 %v657
    %v961 = vunpack.c.h.b16 %v657
    %v962 = vunpack.c.l.b16 %v658
    %v963 = vunpack.c.h.b16 %v658
    %v964 = vunpack.c.l.b16 %v659
    %v965 = vunpack.c.h.b16 %v659
    %v966 = vunpack.c.l.b16 %v660
    %v967 = vunpack.c.h.b16 %v660
    %v968 = vunpack.c.l.b16 %v661
    %v969 = vunpack.c.h.b16 %v661
    %v970 = vunpack.c.l.b16 %v662
    %v971 = vunpack.c.h.b16 %v662
    %v972 = vunpack.c.l.b16 %v663
    %v973 = vunpack.c.h.b16 %v663
    %v974 = vunpack.c.l.b16 %v664
    %v975 = vunpack.c.h.b16 %v664
    %v976 = vunpack.c.l.b16 %v665
    %v977 = vunpack.c.h.b16 %v665
    %v978 = vunpack.c.l.b16 %v666
    %v979 = vunpack.c.h.b16 %v666
    %v980 = vunpack.c.l.b16 %v667
    %v981 = vunpack.c.h.b16 %v667
    %v982 = vunpack.c.l.b16 %v668
    %v983 = vunpack.c.h.b16 %v668
    %v984 = vunpack.c.l.b16 %v669
    %v985 = vunpack.c.h.b16 %v669
    %v986 = vunpack.c.l.b16 %v670
    %v987 = vunpack.c.h.b16 %v670
    %v988 = vunpack.c.l.b16 %v671
    %v989 = vunpack.c.h.b16 %v671
    %v990 = vunpack.c.l.b16 %v672
    %v991 = vunpack.c.h.b16 %v672
    %v992 = vunpack.c.l.b16 %v673
    %v993 = vunpack.c.h.b16 %v673
    %v994 = vunpack.c.l.b16 %v674
    %v995 = vunpack.c.h.b16 %v674
    %v996 = vunpack.c.l.b16 %v675
    %v997 = vunpack.c.h.b16 %v675
    %v998 = vunpack.c.l.b16 %v676
    %v999 = vunpack.c.h.b16 %v676
    %v1000 = vunpack.c.l.b16 %v677
    %v1001 = vunpack.c.h.b16 %v677
    %v1002 = vunpack.c.l.b16 %v678
    %v1003 = vunpack.c.h.b16 %v678
    %v1004 = vunpack.c.l.b16 %v679
    %v1005 = vunpack.c.h.b16 %v679
    %v1006 = vunpack.c.l.b16 %v680
    %v1007 = vunpack.c.h.b16 %v680
    %v1008 = vunpack.c.l.b16 %v681
    %v1009 = vunpack.c.h.b16 %v681
    %v1010 = vunpack.c.l.b16 %v682
    %v1011 = vunpack.c.h.b16 %v682
    %v1012 = vunpack.c.l.b16 %v683
    %v1013 = vunpack.c.h.b16 %v683
    %v1014 = vunpack.c.l.b16 %v684
    %v1015 = vunpack.c.h.b16 %v684
    %v1016 = vunpack.c.l.b16 %v685
    %v1017 = vunpack.c.h.b16 %v685
    %v1018 = vunpack.c.l.b16 %v686
    %v1019 = vunpack.c.h.b16 %v686
    %v1020 = vunpack.c.l.b16 %v687
    %v1021 = vunpack.c.h.b16 %v687
    %v1022 = vunpack.c.l.b16 %v688
    %v1023 = vunpack.c.h.b16 %v688
    %v1024 = vunpack.c.l.b16 %v689
    %v1025 = vunpack.c.h.b16 %v689
    %v1026 = vunpack.c.l.b16 %v690
    %v1027 = vunpack.c.h.b16 %v690
    %v1028 = vunpack.c.l.b16 %v691
    %v1029 = vunpack.c.h.b16 %v691
    %v1030 = vunpack.c.l.b16 %v692
    %v1031 = vunpack.c.h.b16 %v692
    %v1032 = vunpack.c.l.b16 %v693
    %v1033 = vunpack.c.h.b16 %v693
    %v1034 = vunpack.c.l.b16 %v694
    %v1035 = vunpack.c.h.b16 %v694
    %v1036 = vunpack.c.l.b16 %v695
    %v1037 = vunpack.c.h.b16 %v695
    %v1038 = vunpack.c.l.b16 %v696
    %v1039 = vunpack.c.h.b16 %v696
    %v1040 = vunpack.c.l.b16 %v697
    %v1041 = vunpack.c.h.b16 %v697
    %v1042 = vunpack.c.l.b16 %v698
    %v1043 = vunpack.c.h.b16 %v698
    %v1044 = vunpack.c.l.b16 %v699
    %v1045 = vunpack.c.h.b16 %v699
    %v1046 = vunpack.c.l.b16 %v700
    %v1047 = vunpack.c.h.b16 %v700
    %v1048 = vunpack.c.l.b16 %v701
    %v1049 = vunpack.c.h.b16 %v701
    %v1050 = vunpack.c.l.b16 %v702
    %v1051 = vunpack.c.h.b16 %v702
    %v1052 = vunpack.c.l.b16 %v703
    %v1053 = vunpack.c.h.b16 %v703
    %v1054 = vunpack.c.l.b16 %v704
    %v1055 = vunpack.c.h.b16 %v704
    %v1056 = vunpack.c.l.b16 %v705
    %v1057 = vunpack.c.h.b16 %v705
    %v1058 = vunpack.c.l.b16 %v706
    %v1059 = vunpack.c.h.b16 %v706
    %v1060 = vunpack.c.l.b16 %v707
    %v1061 = vunpack.c.h.b16 %v707
    %v1062 = vunpack.c.l.b16 %v708
    %v1063 = vunpack.c.h.b16 %v708
    %v1064 = vunpack.c.l.b16 %v709
    %v1065 = vunpack.c.h.b16 %v709
    %v1066 = vunpack.c.l.b16 %v710
    %v1067 = vunpack.c.h.b16 %v710
    %v1068 = vunpack.c.l.b16 %v711
    %v1069 = vunpack.c.h.b16 %v711
    %v1070 = vunpack.c.l.b16 %v712
    %v1071 = vunpack.c.h.b16 %v712
    %v1072 = vunpack.c.l.b16 %v713
    %v1073 = vunpack.c.h.b16 %v713
    %v1074 = vunpack.c.l.b16 %v714
    %v1075 = vunpack.c.h.b16 %v714
    %v1076 = vunpack.c.l.b16 %v715
    %v1077 = vunpack.c.h.b16 %v715
    %v1078 = vunpack.c.l.b16 %v716
    %v1079 = vunpack.c.h.b16 %v716
    %v1080 = vunpack.c.l.b16 %v717
    %v1081 = vunpack.c.h.b16 %v717
    %v1082 = vunpack.c.l.b16 %v718
    %v1083 = vunpack.c.h.b16 %v718
    %v1084 = vunpack.c.l.b16 %v719
    %v1085 = vunpack.c.h.b16 %v719
    %v1086 = vunpack.c.l.b16 %v720
    %v1087 = vunpack.c.h.b16 %v720
    %v1088 = vunpack.c.l.b16 %v721
    %v1089 = vunpack.c.h.b16 %v721
    %v1090 = vunpack.c.l.b16 %v722
    %v1091 = vunpack.c.h.b16 %v722
    %v1092 = vunpack.c.l.b16 %v723
    %v1093 = vunpack.c.h.b16 %v723
    %v1094 = vunpack.c.l.b16 %v724
    %v1095 = vunpack.c.h.b16 %v724
    %v1096 = vunpack.c.l.b16 %v725
    %v1097 = vunpack.c.h.b16 %v725
    %v1098 = vunpack.c.l.b16 %v726
    %v1099 = vunpack.c.h.b16 %v726
    %v1100 = vunpack.c.l.b16 %v727
    %v1101 = vunpack.c.h.b16 %v727
    %v1102 = vunpack.c.l.b16 %v728
    %v1103 = vunpack.c.h.b16 %v728
    %v1104 = vunpack.c.l.b16 %v729
    %v1105 = vunpack.c.h.b16 %v729
    %v1106 = vunpack.c.l.b16 %v730
    %v1107 = vunpack.c.h.b16 %v730
    %v1108 = vunpack.c.l.b16 %v731
    %v1109 = vunpack.c.h.b16 %v731
    %v1110 = vunpack.c.l.b16 %v732
    %v1111 = vunpack.c.h.b16 %v732
    %v1112 = vunpack.c.l.b16 %v733
    %v1113 = vunpack.c.h.b16 %v733
    %v1114 = vunpack.c.l.b16 %v734
    %v1115 = vunpack.c.h.b16 %v734
    %v1116 = vunpack.c.l.b16 %v735
    %v1117 = vunpack.c.h.b16 %v735
    %v1118 = vunpack.c.l.b16 %v736
    %v1119 = vunpack.c.h.b16 %v736
    %v1120 = vunpack.c.l.b16 %v737
    %v1121 = vunpack.c.h.b16 %v737
    %v1122 = vunpack.c.l.b16 %v738
    %v1123 = vunpack.c.h.b16 %v738
    %v1124 = vunpack.c.l.b16 %v739
    %v1125 = vunpack.c.h.b16 %v739
    %v1126 = vunpack.c.l.b16 %v740
    %v1127 = vunpack.c.h.b16 %v740
    %v1128 = vunpack.c.l.b16 %v741
    %v1129 = vunpack.c.h.b16 %v741
    %v1130 = vunpack.c.l.b16 %v742
    %v1131 = vunpack.c.h.b16 %v742
    %v1132 = vunpack.c.l.b16 %v743
    %v1133 = vunpack.c.h.b16 %v743
    %v1134 = vunpack.c.l.b16 %v744
    %v1135 = vunpack.c.h.b16 %v744
    %v1136 = vunpack.c.l.b16 %v745
    %v1137 = vunpack.c.h.b16 %v745
    %v1138 = vunpack.c.l.b16 %v746
    %v1139 = vunpack.c.h.b16 %v746
    %v1140 = vunpack.c.l.b16 %v747
    %v1141 = vunpack.c.h.b16 %v747
    %v1142 = vpack.c.b16 %v890, %v886
    %v1143 = vpack.c.b16 %v891, %v887
    %v1144 = vpack.c.b16 %v892, %v888
    %v1145 = vpack.c.b16 %v893, %v889
    %v1146 = vpack.c.b16 %v898, %v894
    %v1147 = vpack.c.b16 %v899, %v895
    %v1148 = vpack.c.b16 %v900, %v896
    %v1149 = vpack.c.b16 %v901, %v897
    %v1150 = vpack.c.b16 %v906, %v902
    %v1151 = vpack.c.b16 %v907, %v903
    %v1152 = vpack.c.b16 %v908, %v904
    %v1153 = vpack.c.b16 %v909, %v905
    %v1154 = vpack.c.b16 %v914, %v910
    %v1155 = vpack.c.b16 %v915, %v911
    %v1156 = vpack.c.b16 %v916, %v912
    %v1157 = vpack.c.b16 %v917, %v913
    %v1158 = vpack.c.b16 %v922, %v918
    %v1159 = vpack.c.b16 %v923, %v919
    %v1160 = vpack.c.b16 %v924, %v920
    %v1161 = vpack.c.b16 %v925, %v921
    %v1162 = vpack.c.b16 %v930, %v926
    %v1163 = vpack.c.b16 %v931, %v927
    %v1164 = vpack.c.b16 %v932, %v928
    %v1165 = vpack.c.b16 %v933, %v929
    %v1166 = vpack.c.b16 %v938, %v934
    %v1167 = vpack.c.b16 %v939, %v935
    %v1168 = vpack.c.b16 %v940, %v936
    %v1169 = vpack.c.b16 %v941, %v937
    %v1170 = vpack.c.b16 %v946, %v942
    %v1171 = vpack.c.b16 %v947, %v943
    %v1172 = vpack.c.b16 %v948, %v944
    %v1173 = vpack.c.b16 %v949, %v945
    %v1174 = vpack.c.b16 %v954, %v950
    %v1175 = vpack.c.b16 %v955, %v951
    %v1176 = vpack.c.b16 %v956, %v952
    %v1177 = vpack.c.b16 %v957, %v953
    %v1178 = vpack.c.b16 %v962, %v958
    %v1179 = vpack.c.b16 %v963, %v959
    %v1180 = vpack.c.b16 %v964, %v960
    %v1181 = vpack.c.b16 %v965, %v961
    %v1182 = vpack.c.b16 %v970, %v966
    %v1183 = vpack.c.b16 %v971, %v967
    %v1184 = vpack.c.b16 %v972, %v968
    %v1185 = vpack.c.b16 %v973, %v969
    %v1186 = vpack.c.b16 %v978, %v974
    %v1187 = vpack.c.b16 %v979, %v975
    %v1188 = vpack.c.b16 %v980, %v976
    %v1189 = vpack.c.b16 %v981, %v977
    %v1190 = vpack.c.b16 %v986, %v982
    %v1191 = vpack.c.b16 %v987, %v983
    %v1192 = vpack.c.b16 %v988, %v984
    %v1193 = vpack.c.b16 %v989, %v985
    %v1194 = vpack.c.b16 %v994, %v990
    %v1195 = vpack.c.b16 %v995, %v991
    %v1196 = vpack.c.b16 %v996, %v992
    %v1197 = vpack.c.b16 %v997, %v993
    %v1198 = vpack.c.b16 %v1002, %v998
    %v1199 = vpack.c.b16 %v1003, %v999
    %v1200 = vpack.c.b16 %v1004, %v1000
    %v1201 = vpack.c.b16 %v1005, %v1001
    %v1202 = vpack.c.b16 %v1010, %v1006
    %v1203 = vpack.c.b16 %v1011, %v1007
    %v1204 = vpack.c.b16 %v1012, %v1008
    %v1205 = vpack.c.b16 %v1013, %v1009
    %v1206 = vpack.c.b16 %v1018, %v1014
    %v1207 = vpack.c.b16 %v1019, %v1015
    %v1208 = vpack.c.b16 %v1020, %v1016
    %v1209 = vpack.c.b16 %v1021, %v1017
    %v1210 = vpack.c.b16 %v1026, %v1022
    %v1211 = vpack.c.b16 %v1027, %v1023
    %v1212 = vpack.c.b16 %v1028, %v1024
    %v1213 = vpack.c.b16 %v1029, %v1025
    %v1214 = vpack.c.b16 %v1034, %v1030
    %v1215 = vpack.c.b16 %v1035, %v1031
    %v1216 = vpack.c.b16 %v1036, %v1032
    %v1217 = vpack.c.b16 %v1037, %v1033
    %v1218 = vpack.c.b16 %v1042, %v1038
    %v1219 = vpack.c.b16 %v1043, %v1039
    %v1220 = vpack.c.b16 %v1044, %v1040
    %v1221 = vpack.c.b16 %v1045, %v1041
    %v1222 = vpack.c.b16 %v1050, %v1046
    %v1223 = vpack.c.b16 %v1051, %v1047
    %v1224 = vpack.c.b16 %v1052, %v1048
    %v1225 = vpack.c.b16 %v1053, %v1049
    %v1226 = vpack.c.b16 %v1058, %v1054
    %v1227 = vpack.c.b16 %v1059, %v1055
    %v1228 = vpack.c.b16 %v1060, %v1056
    %v1229 = vpack.c.b16 %v1061, %v1057
    %v1230 = vpack.c.b16 %v1066, %v1062
    %v1231 = vpack.c.b16 %v1067, %v1063
    %v1232 = vpack.c.b16 %v1068, %v1064
    %v1233 = vpack.c.b16 %v1069, %v1065
    %v1234 = vpack.c.b16 %v1074, %v1070
    %v1235 = vpack.c.b16 %v1075, %v1071
    %v1236 = vpack.c.b16 %v1076, %v1072
    %v1237 = vpack.c.b16 %v1077, %v1073
    %v1238 = vpack.c.b16 %v1082, %v1078
    %v1239 = vpack.c.b16 %v1083, %v1079
    %v1240 = vpack.c.b16 %v1084, %v1080
    %v1241 = vpack.c.b16 %v1085, %v1081
    %v1242 = vpack.c.b16 %v1090, %v1086
    %v1243 = vpack.c.b16 %v1091, %v1087
    %v1244 = vpack.c.b16 %v1092, %v1088
    %v1245 = vpack.c.b16 %v1093, %v1089
    %v1246 = vpack.c.b16 %v1098, %v1094
    %v1247 = vpack.c.b16 %v1099, %v1095
    %v1248 = vpack.c.b16 %v1100, %v1096
    %v1249 = vpack.c.b16 %v1101, %v1097
    %v1250 = vpack.c.b16 %v1106, %v1102
    %v1251 = vpack.c.b16 %v1107, %v1103
    %v1252 = vpack.c.b16 %v1108, %v1104
    %v1253 = vpack.c.b16 %v1109, %v1105
    %v1254 = vpack.c.b16 %v1114, %v1110
    %v1255 = vpack.c.b16 %v1115, %v1111
    %v1256 = vpack.c.b16 %v1116, %v1112
    %v1257 = vpack.c.b16 %v1117, %v1113
    %v1258 = vpack.c.b16 %v1122, %v1118
    %v1259 = vpack.c.b16 %v1123, %v1119
    %v1260 = vpack.c.b16 %v1124, %v1120
    %v1261 = vpack.c.b16 %v1125, %v1121
    %v1262 = vpack.c.b16 %v1130, %v1126
    %v1263 = vpack.c.b16 %v1131, %v1127
    %v1264 = vpack.c.b16 %v1132, %v1128
    %v1265 = vpack.c.b16 %v1133, %v1129
    %v1266 = vpack.c.b16 %v1138, %v1134
    %v1267 = vpack.c.b16 %v1139, %v1135
    %v1268 = vpack.c.b16 %v1140, %v1136
    %v1269 = vpack.c.b16 %v1141, %v1137
    %1398 = vmatpush.bf16.msra.mxu0 %v1170
    %1399 = vmatpush.bf16.msra.mxu0 %v1166
    %1400 = vmatpush.bf16.msra.mxu0 %v1162
    %1401 = vmatpush.bf16.msra.mxu0 %v1158
    %1402 = vmatpush.bf16.msra.mxu0 %v1154
    %1403 = vmatpush.bf16.msra.mxu0 %v1150
    %1404 = vmatpush.bf16.msra.mxu0 %v1146
    %1405 = vmatpush.bf16.msra.mxu0 %v1142
    %1406 = vmatmul.bf16.gmra.mxu0 %v616
    %v1407 = vpop.f32.mrf.mxu0
    %v1408 = vadd.f32 %v750, %v1407
    %v1409 = vpop.f32.mrf.mxu0
    %1410 = vdwg.mxu0
    %1411 = vmatpush.bf16.msra.mxu0 %v1202
    %1412 = vmatpush.bf16.msra.mxu0 %v1198
    %1413 = vmatpush.bf16.msra.mxu0 %v1194
    %1414 = vmatpush.bf16.msra.mxu0 %v1190
    %1415 = vmatpush.bf16.msra.mxu0 %v1186
    %1416 = vmatpush.bf16.msra.mxu0 %v1182
    %1417 = vmatpush.bf16.msra.mxu0 %v1178
    %1418 = vmatpush.bf16.msra.mxu0 %v1174
    %1419 = vmatmul.bf16.gmra.mxu0 %v617
    %v1420 = vpop.f32.mrf.mxu0
    %v1421 = vadd.f32 %v1408, %v1420
    %v1422 = vpop.f32.mrf.mxu0
    %1423 = vdwg.mxu0
    %1424 = vmatpush.bf16.msra.mxu0 %v1234
    %1425 = vmatpush.bf16.msra.mxu0 %v1230
    %1426 = vmatpush.bf16.msra.mxu0 %v1226
    %1427 = vmatpush.bf16.msra.mxu0 %v1222
    %1428 = vmatpush.bf16.msra.mxu0 %v1218
    %1429 = vmatpush.bf16.msra.mxu0 %v1214
    %1430 = vmatpush.bf16.msra.mxu0 %v1210
    %1431 = vmatpush.bf16.msra.mxu0 %v1206
    %1432 = vmatmul.bf16.gmra.mxu0 %v618
    %v1433 = vpop.f32.mrf.mxu0
    %v1434 = vadd.f32 %v1421, %v1433
    %v1435 = vpop.f32.mrf.mxu0
    %1436 = vdwg.mxu0
    %1437 = vmatpush.bf16.msra.mxu0 %v1266
    %1438 = vmatpush.bf16.msra.mxu0 %v1262
    %1439 = vmatpush.bf16.msra.mxu0 %v1258
    %1440 = vmatpush.bf16.msra.mxu0 %v1254
    %1441 = vmatpush.bf16.msra.mxu0 %v1250
    %1442 = vmatpush.bf16.msra.mxu0 %v1246
    %1443 = vmatpush.bf16.msra.mxu0 %v1242
    %1444 = vmatpush.bf16.msra.mxu0 %v1238
    %1445 = vmatmul.bf16.gmra.mxu0 %v619
    %v1446 = vpop.f32.mrf.mxu0
    %v1447 = vadd.f32 %v1434, %v1446
    %v1448 = vpop.f32.mrf.mxu0
    %1449 = vdwg.mxu0
    %1450 = vmatpush.bf16.msra.mxu0 %v1171
    %1451 = vmatpush.bf16.msra.mxu0 %v1167
    %1452 = vmatpush.bf16.msra.mxu0 %v1163
    %1453 = vmatpush.bf16.msra.mxu0 %v1159
    %1454 = vmatpush.bf16.msra.mxu0 %v1155
    %1455 = vmatpush.bf16.msra.mxu0 %v1151
    %1456 = vmatpush.bf16.msra.mxu0 %v1147
    %1457 = vmatpush.bf16.msra.mxu0 %v1143
    %1458 = vmatmul.bf16.gmra.mxu0 %v616
    %v1459 = vpop.f32.mrf.mxu0
    %v1460 = vadd.f32 %v751, %v1459
    %v1461 = vpop.f32.mrf.mxu0
    %1462 = vdwg.mxu0
    %1463 = vmatpush.bf16.msra.mxu0 %v1203
    %1464 = vmatpush.bf16.msra.mxu0 %v1199
    %1465 = vmatpush.bf16.msra.mxu0 %v1195
    %1466 = vmatpush.bf16.msra.mxu0 %v1191
    %1467 = vmatpush.bf16.msra.mxu0 %v1187
    %1468 = vmatpush.bf16.msra.mxu0 %v1183
    %1469 = vmatpush.bf16.msra.mxu0 %v1179
    %1470 = vmatpush.bf16.msra.mxu0 %v1175
    %1471 = vmatmul.bf16.gmra.mxu0 %v617
    %v1472 = vpop.f32.mrf.mxu0
    %v1473 = vadd.f32 %v1460, %v1472
    %v1474 = vpop.f32.mrf.mxu0
    %1475 = vdwg.mxu0
    %1476 = vmatpush.bf16.msra.mxu0 %v1235
    %1477 = vmatpush.bf16.msra.mxu0 %v1231
    %1478 = vmatpush.bf16.msra.mxu0 %v1227
    %1479 = vmatpush.bf16.msra.mxu0 %v1223
    %1480 = vmatpush.bf16.msra.mxu0 %v1219
    %1481 = vmatpush.bf16.msra.mxu0 %v1215
    %1482 = vmatpush.bf16.msra.mxu0 %v1211
    %1483 = vmatpush.bf16.msra.mxu0 %v1207
    %1484 = vmatmul.bf16.gmra.mxu0 %v618
    %v1485 = vpop.f32.mrf.mxu0
    %v1486 = vadd.f32 %v1473, %v1485
    %v1487 = vpop.f32.mrf.mxu0
    %1488 = vdwg.mxu0
    %1489 = vmatpush.bf16.msra.mxu0 %v1267
    %1490 = vmatpush.bf16.msra.mxu0 %v1263
    %1491 = vmatpush.bf16.msra.mxu0 %v1259
    %1492 = vmatpush.bf16.msra.mxu0 %v1255
    %1493 = vmatpush.bf16.msra.mxu0 %v1251
    %1494 = vmatpush.bf16.msra.mxu0 %v1247
    %1495 = vmatpush.bf16.msra.mxu0 %v1243
    %1496 = vmatpush.bf16.msra.mxu0 %v1239
    %1497 = vmatmul.bf16.gmra.mxu0 %v619
    %v1498 = vpop.f32.mrf.mxu0
    %v1499 = vadd.f32 %v1486, %v1498
    %v1500 = vpop.f32.mrf.mxu0
    %1501 = vdwg.mxu0
    %1502 = vmatpush.bf16.msra.mxu0 %v1172
    %1503 = vmatpush.bf16.msra.mxu0 %v1168
    %1504 = vmatpush.bf16.msra.mxu0 %v1164
    %1505 = vmatpush.bf16.msra.mxu0 %v1160
    %1506 = vmatpush.bf16.msra.mxu0 %v1156
    %1507 = vmatpush.bf16.msra.mxu0 %v1152
    %1508 = vmatpush.bf16.msra.mxu0 %v1148
    %1509 = vmatpush.bf16.msra.mxu0 %v1144
    %1510 = vmatmul.bf16.gmra.mxu0 %v616
    %v1511 = vpop.f32.mrf.mxu0
    %v1512 = vadd.f32 %v752, %v1511
    %v1513 = vpop.f32.mrf.mxu0
    %1514 = vdwg.mxu0
    %1515 = vmatpush.bf16.msra.mxu0 %v1204
    %1516 = vmatpush.bf16.msra.mxu0 %v1200
    %1517 = vmatpush.bf16.msra.mxu0 %v1196
    %1518 = vmatpush.bf16.msra.mxu0 %v1192
    %1519 = vmatpush.bf16.msra.mxu0 %v1188
    %1520 = vmatpush.bf16.msra.mxu0 %v1184
    %1521 = vmatpush.bf16.msra.mxu0 %v1180
    %1522 = vmatpush.bf16.msra.mxu0 %v1176
    %1523 = vmatmul.bf16.gmra.mxu0 %v617
    %v1524 = vpop.f32.mrf.mxu0
    %v1525 = vadd.f32 %v1512, %v1524
    %v1526 = vpop.f32.mrf.mxu0
    %1527 = vdwg.mxu0
    %1528 = vmatpush.bf16.msra.mxu0 %v1236
    %1529 = vmatpush.bf16.msra.mxu0 %v1232
    %1530 = vmatpush.bf16.msra.mxu0 %v1228
    %1531 = vmatpush.bf16.msra.mxu0 %v1224
    %1532 = vmatpush.bf16.msra.mxu0 %v1220
    %1533 = vmatpush.bf16.msra.mxu0 %v1216
    %1534 = vmatpush.bf16.msra.mxu0 %v1212
    %1535 = vmatpush.bf16.msra.mxu0 %v1208
    %1536 = vmatmul.bf16.gmra.mxu0 %v618
    %v1537 = vpop.f32.mrf.mxu0
    %v1538 = vadd.f32 %v1525, %v1537
    %v1539 = vpop.f32.mrf.mxu0
    %1540 = vdwg.mxu0
    %1541 = vmatpush.bf16.msra.mxu0 %v1268
    %1542 = vmatpush.bf16.msra.mxu0 %v1264
    %1543 = vmatpush.bf16.msra.mxu0 %v1260
    %1544 = vmatpush.bf16.msra.mxu0 %v1256
    %1545 = vmatpush.bf16.msra.mxu0 %v1252
    %1546 = vmatpush.bf16.msra.mxu0 %v1248
    %1547 = vmatpush.bf16.msra.mxu0 %v1244
    %1548 = vmatpush.bf16.msra.mxu0 %v1240
    %1549 = vmatmul.bf16.gmra.mxu0 %v619
    %v1550 = vpop.f32.mrf.mxu0
    %v1551 = vadd.f32 %v1538, %v1550
    %v1552 = vpop.f32.mrf.mxu0
    %1553 = vdwg.mxu0
    %1554 = vmatpush.bf16.msra.mxu0 %v1173
    %1555 = vmatpush.bf16.msra.mxu0 %v1169
    %1556 = vmatpush.bf16.msra.mxu0 %v1165
    %1557 = vmatpush.bf16.msra.mxu0 %v1161
    %1558 = vmatpush.bf16.msra.mxu0 %v1157
    %1559 = vmatpush.bf16.msra.mxu0 %v1153
    %1560 = vmatpush.bf16.msra.mxu0 %v1149
    %1561 = vmatpush.bf16.msra.mxu0 %v1145
    %1562 = vmatmul.bf16.gmra.mxu0 %v616
    %v1563 = vpop.f32.mrf.mxu0
    %v1564 = vadd.f32 %v753, %v1563
    %v1565 = vpop.f32.mrf.mxu0
    %1566 = vdwg.mxu0
    %1567 = vmatpush.bf16.msra.mxu0 %v1205
    %1568 = vmatpush.bf16.msra.mxu0 %v1201
    %1569 = vmatpush.bf16.msra.mxu0 %v1197
    %1570 = vmatpush.bf16.msra.mxu0 %v1193
    %1571 = vmatpush.bf16.msra.mxu0 %v1189
    %1572 = vmatpush.bf16.msra.mxu0 %v1185
    %1573 = vmatpush.bf16.msra.mxu0 %v1181
    %1574 = vmatpush.bf16.msra.mxu0 %v1177
    %1575 = vmatmul.bf16.gmra.mxu0 %v617
    %v1576 = vpop.f32.mrf.mxu0
    %v1577 = vadd.f32 %v1564, %v1576
    %v1578 = vpop.f32.mrf.mxu0
    %1579 = vdwg.mxu0
    %1580 = vmatpush.bf16.msra.mxu0 %v1237
    %1581 = vmatpush.bf16.msra.mxu0 %v1233
    %1582 = vmatpush.bf16.msra.mxu0 %v1229
    %1583 = vmatpush.bf16.msra.mxu0 %v1225
    %1584 = vmatpush.bf16.msra.mxu0 %v1221
    %1585 = vmatpush.bf16.msra.mxu0 %v1217
    %1586 = vmatpush.bf16.msra.mxu0 %v1213
    %1587 = vmatpush.bf16.msra.mxu0 %v1209
    %1588 = vmatmul.bf16.gmra.mxu0 %v618
    %v1589 = vpop.f32.mrf.mxu0
    %v1590 = vadd.f32 %v1577, %v1589
    %v1591 = vpop.f32.mrf.mxu0
    %1592 = vdwg.mxu0
    %1593 = vmatpush.bf16.msra.mxu0 %v1269
    %1594 = vmatpush.bf16.msra.mxu0 %v1265
    %1595 = vmatpush.bf16.msra.mxu0 %v1261
    %1596 = vmatpush.bf16.msra.mxu0 %v1257
    %1597 = vmatpush.bf16.msra.mxu0 %v1253
    %1598 = vmatpush.bf16.msra.mxu0 %v1249
    %1599 = vmatpush.bf16.msra.mxu0 %v1245
    %1600 = vmatpush.bf16.msra.mxu0 %v1241
    %1601 = vmatmul.bf16.gmra.mxu0 %v619
    %v1602 = vpop.f32.mrf.mxu0
    %v1603 = vadd.f32 %v1590, %v1602
    %v1604 = vpop.f32.mrf.mxu0
    %1605 = vdwg.mxu0
    %v1606 = vmul.f32 %v1447, 0.2
    %v1607 = vmul.f32 %v1499, 0.2
    %v1608 = vmul.f32 %v1551, 0.2
    %v1609 = vmul.f32 %v1603, 0.2
    %v1610 = vmax.f32 %v1447, %v1606
    %v1611 = vmax.f32 %v1499, %v1607
    %v1612 = vmax.f32 %v1551, %v1608
    %v1613 = vmax.f32 %v1603, %v1609
    %v1614 = vpack.c.bf16 %v1610, %v1610
    %v1615 = vpack.c.bf16 %v1611, %v1611
    %v1616 = vpack.c.bf16 %v1612, %v1612
    %v1617 = vpack.c.bf16 %v1613, %v1613
    %v1618 = vld [vmem:[#allocation7] sm:$0xff]
    %v1619 = vld [vmem:[#allocation7 + $0x8] sm:$0xff]
    %v1620 = vld [vmem:[#allocation7 + $0x10] sm:$0xff]
    %v1621 = vld [vmem:[#allocation7 + $0x18] sm:$0xff]
    %v1622 = vld [vmem:[#allocation7 + $0x20] sm:$0xff]
    %v1623 = vld [vmem:[#allocation7 + $0x28] sm:$0xff]
    %v1624 = vld [vmem:[#allocation7 + $0x30] sm:$0xff]
    %v1625 = vld [vmem:[#allocation7 + $0x38] sm:$0xff]
    %v1626 = vld [vmem:[#allocation7 + $0x40] sm:$0xff]
    %v1627 = vld [vmem:[#allocation7 + $0x48] sm:$0xff]
    %v1628 = vld [vmem:[#allocation7 + $0x50] sm:$0xff]
    %v1629 = vld [vmem:[#allocation7 + $0x58] sm:$0xff]
    %v1630 = vld [vmem:[#allocation7 + $0x60] sm:$0xff]
    %v1631 = vld [vmem:[#allocation7 + $0x68] sm:$0xff]
    %v1632 = vld [vmem:[#allocation7 + $0x70] sm:$0xff]
    %v1633 = vld [vmem:[#allocation7 + $0x78] sm:$0xff]
    %v1634 = vld [vmem:[#allocation7 + $0x80] sm:$0xff]
    %v1635 = vld [vmem:[#allocation7 + $0x88] sm:$0xff]
    %v1636 = vld [vmem:[#allocation7 + $0x90] sm:$0xff]
    %v1637 = vld [vmem:[#allocation7 + $0x98] sm:$0xff]
    %v1638 = vld [vmem:[#allocation7 + $0xa0] sm:$0xff]
    %v1639 = vld [vmem:[#allocation7 + $0xa8] sm:$0xff]
    %v1640 = vld [vmem:[#allocation7 + $0xb0] sm:$0xff]
    %v1641 = vld [vmem:[#allocation7 + $0xb8] sm:$0xff]
    %v1642 = vld [vmem:[#allocation7 + $0xc0] sm:$0xff]
    %v1643 = vld [vmem:[#allocation7 + $0xc8] sm:$0xff]
    %v1644 = vld [vmem:[#allocation7 + $0xd0] sm:$0xff]
    %v1645 = vld [vmem:[#allocation7 + $0xd8] sm:$0xff]
    %v1646 = vld [vmem:[#allocation7 + $0xe0] sm:$0xff]
    %v1647 = vld [vmem:[#allocation7 + $0xe8] sm:$0xff]
    %v1648 = vld [vmem:[#allocation7 + $0xf0] sm:$0xff]
    %v1649 = vld [vmem:[#allocation7 + $0xf8] sm:$0xff]
    %v1650 = vld [vmem:[#allocation7 + $0x100] sm:$0xff]
    %v1651 = vld [vmem:[#allocation7 + $0x108] sm:$0xff]
    %v1652 = vld [vmem:[#allocation7 + $0x110] sm:$0xff]
    %v1653 = vld [vmem:[#allocation7 + $0x118] sm:$0xff]
    %v1654 = vld [vmem:[#allocation7 + $0x120] sm:$0xff]
    %v1655 = vld [vmem:[#allocation7 + $0x128] sm:$0xff]
    %v1656 = vld [vmem:[#allocation7 + $0x130] sm:$0xff]
    %v1657 = vld [vmem:[#allocation7 + $0x138] sm:$0xff]
    %v1658 = vld [vmem:[#allocation7 + $0x140] sm:$0xff]
    %v1659 = vld [vmem:[#allocation7 + $0x148] sm:$0xff]
    %v1660 = vld [vmem:[#allocation7 + $0x150] sm:$0xff]
    %v1661 = vld [vmem:[#allocation7 + $0x158] sm:$0xff]
    %v1662 = vld [vmem:[#allocation7 + $0x160] sm:$0xff]
    %v1663 = vld [vmem:[#allocation7 + $0x168] sm:$0xff]
    %v1664 = vld [vmem:[#allocation7 + $0x170] sm:$0xff]
    %v1665 = vld [vmem:[#allocation7 + $0x178] sm:$0xff]
    %v1666 = vld [vmem:[#allocation7 + $0x180] sm:$0xff]
    %v1667 = vld [vmem:[#allocation7 + $0x188] sm:$0xff]
    %v1668 = vld [vmem:[#allocation7 + $0x190] sm:$0xff]
    %v1669 = vld [vmem:[#allocation7 + $0x198] sm:$0xff]
    %v1670 = vld [vmem:[#allocation7 + $0x1a0] sm:$0xff]
    %v1671 = vld [vmem:[#allocation7 + $0x1a8] sm:$0xff]
    %v1672 = vld [vmem:[#allocation7 + $0x1b0] sm:$0xff]
    %v1673 = vld [vmem:[#allocation7 + $0x1b8] sm:$0xff]
    %v1674 = vld [vmem:[#allocation7 + $0x1c0] sm:$0xff]
    %v1675 = vld [vmem:[#allocation7 + $0x1c8] sm:$0xff]
    %v1676 = vld [vmem:[#allocation7 + $0x1d0] sm:$0xff]
    %v1677 = vld [vmem:[#allocation7 + $0x1d8] sm:$0xff]
    %v1678 = vld [vmem:[#allocation7 + $0x1e0] sm:$0xff]
    %v1679 = vld [vmem:[#allocation7 + $0x1e8] sm:$0xff]
    %v1680 = vld [vmem:[#allocation7 + $0x1f0] sm:$0xff]
    %v1681 = vld [vmem:[#allocation7 + $0x1f8] sm:$0xff]
    %v1682 = vld [vmem:[#allocation7 + $0x200] sm:$0xff]
    %v1683 = vld [vmem:[#allocation7 + $0x208] sm:$0xff]
    %v1684 = vld [vmem:[#allocation7 + $0x210] sm:$0xff]
    %v1685 = vld [vmem:[#allocation7 + $0x218] sm:$0xff]
    %v1686 = vld [vmem:[#allocation7 + $0x220] sm:$0xff]
    %v1687 = vld [vmem:[#allocation7 + $0x228] sm:$0xff]
    %v1688 = vld [vmem:[#allocation7 + $0x230] sm:$0xff]
    %v1689 = vld [vmem:[#allocation7 + $0x238] sm:$0xff]
    %v1690 = vld [vmem:[#allocation7 + $0x240] sm:$0xff]
    %v1691 = vld [vmem:[#allocation7 + $0x248] sm:$0xff]
    %v1692 = vld [vmem:[#allocation7 + $0x250] sm:$0xff]
    %v1693 = vld [vmem:[#allocation7 + $0x258] sm:$0xff]
    %v1694 = vld [vmem:[#allocation7 + $0x260] sm:$0xff]
    %v1695 = vld [vmem:[#allocation7 + $0x268] sm:$0xff]
    %v1696 = vld [vmem:[#allocation7 + $0x270] sm:$0xff]
    %v1697 = vld [vmem:[#allocation7 + $0x278] sm:$0xff]
    %v1698 = vld [vmem:[#allocation7 + $0x280] sm:$0xff]
    %v1699 = vld [vmem:[#allocation7 + $0x288] sm:$0xff]
    %v1700 = vld [vmem:[#allocation7 + $0x290] sm:$0xff]
    %v1701 = vld [vmem:[#allocation7 + $0x298] sm:$0xff]
    %v1702 = vld [vmem:[#allocation7 + $0x2a0] sm:$0xff]
    %v1703 = vld [vmem:[#allocation7 + $0x2a8] sm:$0xff]
    %v1704 = vld [vmem:[#allocation7 + $0x2b0] sm:$0xff]
    %v1705 = vld [vmem:[#allocation7 + $0x2b8] sm:$0xff]
    %v1706 = vld [vmem:[#allocation7 + $0x2c0] sm:$0xff]
    %v1707 = vld [vmem:[#allocation7 + $0x2c8] sm:$0xff]
    %v1708 = vld [vmem:[#allocation7 + $0x2d0] sm:$0xff]
    %v1709 = vld [vmem:[#allocation7 + $0x2d8] sm:$0xff]
    %v1710 = vld [vmem:[#allocation7 + $0x2e0] sm:$0xff]
    %v1711 = vld [vmem:[#allocation7 + $0x2e8] sm:$0xff]
    %v1712 = vld [vmem:[#allocation7 + $0x2f0] sm:$0xff]
    %v1713 = vld [vmem:[#allocation7 + $0x2f8] sm:$0xff]
    %v1714 = vld [vmem:[#allocation7 + $0x300] sm:$0xff]
    %v1715 = vld [vmem:[#allocation7 + $0x308] sm:$0xff]
    %v1716 = vld [vmem:[#allocation7 + $0x310] sm:$0xff]
    %v1717 = vld [vmem:[#allocation7 + $0x318] sm:$0xff]
    %v1718 = vld [vmem:[#allocation7 + $0x320] sm:$0xff]
    %v1719 = vld [vmem:[#allocation7 + $0x328] sm:$0xff]
    %v1720 = vld [vmem:[#allocation7 + $0x330] sm:$0xff]
    %v1721 = vld [vmem:[#allocation7 + $0x338] sm:$0xff]
    %v1722 = vld [vmem:[#allocation7 + $0x340] sm:$0xff]
    %v1723 = vld [vmem:[#allocation7 + $0x348] sm:$0xff]
    %v1724 = vld [vmem:[#allocation7 + $0x350] sm:$0xff]
    %v1725 = vld [vmem:[#allocation7 + $0x358] sm:$0xff]
    %v1726 = vld [vmem:[#allocation7 + $0x360] sm:$0xff]
    %v1727 = vld [vmem:[#allocation7 + $0x368] sm:$0xff]
    %v1728 = vld [vmem:[#allocation7 + $0x370] sm:$0xff]
    %v1729 = vld [vmem:[#allocation7 + $0x378] sm:$0xff]
    %v1730 = vld [vmem:[#allocation7 + $0x380] sm:$0xff]
    %v1731 = vld [vmem:[#allocation7 + $0x388] sm:$0xff]
    %v1732 = vld [vmem:[#allocation7 + $0x390] sm:$0xff]
    %v1733 = vld [vmem:[#allocation7 + $0x398] sm:$0xff]
    %v1734 = vld [vmem:[#allocation7 + $0x3a0] sm:$0xff]
    %v1735 = vld [vmem:[#allocation7 + $0x3a8] sm:$0xff]
    %v1736 = vld [vmem:[#allocation7 + $0x3b0] sm:$0xff]
    %v1737 = vld [vmem:[#allocation7 + $0x3b8] sm:$0xff]
    %v1738 = vld [vmem:[#allocation7 + $0x3c0] sm:$0xff]
    %v1739 = vld [vmem:[#allocation7 + $0x3c8] sm:$0xff]
    %v1740 = vld [vmem:[#allocation7 + $0x3d0] sm:$0xff]
    %v1741 = vld [vmem:[#allocation7 + $0x3d8] sm:$0xff]
    %v1742 = vld [vmem:[#allocation7 + $0x3e0] sm:$0xff]
    %v1743 = vld [vmem:[#allocation7 + $0x3e8] sm:$0xff]
    %v1744 = vld [vmem:[#allocation7 + $0x3f0] sm:$0xff]
    %v1745 = vld [vmem:[#allocation7 + $0x3f8] sm:$0xff]
    %v1746 = vld [vmem:[%s7] sm:$0xf]
    %v1748 = vperm.slane %v1746, 0
    %v1749 = vperm.slane %v1746, 1
    %v1750 = vperm.slane %v1746, 2
    %v1751 = vperm.slane %v1746, 3
    %v1884 = vunpack.c.l.b16 %v1618
    %v1885 = vunpack.c.h.b16 %v1618
    %v1886 = vunpack.c.l.b16 %v1619
    %v1887 = vunpack.c.h.b16 %v1619
    %v1888 = vunpack.c.l.b16 %v1620
    %v1889 = vunpack.c.h.b16 %v1620
    %v1890 = vunpack.c.l.b16 %v1621
    %v1891 = vunpack.c.h.b16 %v1621
    %v1892 = vunpack.c.l.b16 %v1622
    %v1893 = vunpack.c.h.b16 %v1622
    %v1894 = vunpack.c.l.b16 %v1623
    %v1895 = vunpack.c.h.b16 %v1623
    %v1896 = vunpack.c.l.b16 %v1624
    %v1897 = vunpack.c.h.b16 %v1624
    %v1898 = vunpack.c.l.b16 %v1625
    %v1899 = vunpack.c.h.b16 %v1625
    %v1900 = vunpack.c.l.b16 %v1626
    %v1901 = vunpack.c.h.b16 %v1626
    %v1902 = vunpack.c.l.b16 %v1627
    %v1903 = vunpack.c.h.b16 %v1627
    %v1904 = vunpack.c.l.b16 %v1628
    %v1905 = vunpack.c.h.b16 %v1628
    %v1906 = vunpack.c.l.b16 %v1629
    %v1907 = vunpack.c.h.b16 %v1629
    %v1908 = vunpack.c.l.b16 %v1630
    %v1909 = vunpack.c.h.b16 %v1630
    %v1910 = vunpack.c.l.b16 %v1631
    %v1911 = vunpack.c.h.b16 %v1631
    %v1912 = vunpack.c.l.b16 %v1632
    %v1913 = vunpack.c.h.b16 %v1632
    %v1914 = vunpack.c.l.b16 %v1633
    %v1915 = vunpack.c.h.b16 %v1633
    %v1916 = vunpack.c.l.b16 %v1634
    %v1917 = vunpack.c.h.b16 %v1634
    %v1918 = vunpack.c.l.b16 %v1635
    %v1919 = vunpack.c.h.b16 %v1635
    %v1920 = vunpack.c.l.b16 %v1636
    %v1921 = vunpack.c.h.b16 %v1636
    %v1922 = vunpack.c.l.b16 %v1637
    %v1923 = vunpack.c.h.b16 %v1637
    %v1924 = vunpack.c.l.b16 %v1638
    %v1925 = vunpack.c.h.b16 %v1638
    %v1926 = vunpack.c.l.b16 %v1639
    %v1927 = vunpack.c.h.b16 %v1639
    %v1928 = vunpack.c.l.b16 %v1640
    %v1929 = vunpack.c.h.b16 %v1640
    %v1930 = vunpack.c.l.b16 %v1641
    %v1931 = vunpack.c.h.b16 %v1641
    %v1932 = vunpack.c.l.b16 %v1642
    %v1933 = vunpack.c.h.b16 %v1642
    %v1934 = vunpack.c.l.b16 %v1643
    %v1935 = vunpack.c.h.b16 %v1643
    %v1936 = vunpack.c.l.b16 %v1644
    %v1937 = vunpack.c.h.b16 %v1644
    %v1938 = vunpack.c.l.b16 %v1645
    %v1939 = vunpack.c.h.b16 %v1645
    %v1940 = vunpack.c.l.b16 %v1646
    %v1941 = vunpack.c.h.b16 %v1646
    %v1942 = vunpack.c.l.b16 %v1647
    %v1943 = vunpack.c.h.b16 %v1647
    %v1944 = vunpack.c.l.b16 %v1648
    %v1945 = vunpack.c.h.b16 %v1648
    %v1946 = vunpack.c.l.b16 %v1649
    %v1947 = vunpack.c.h.b16 %v1649
    %v1948 = vunpack.c.l.b16 %v1650
    %v1949 = vunpack.c.h.b16 %v1650
    %v1950 = vunpack.c.l.b16 %v1651
    %v1951 = vunpack.c.h.b16 %v1651
    %v1952 = vunpack.c.l.b16 %v1652
    %v1953 = vunpack.c.h.b16 %v1652
    %v1954 = vunpack.c.l.b16 %v1653
    %v1955 = vunpack.c.h.b16 %v1653
    %v1956 = vunpack.c.l.b16 %v1654
    %v1957 = vunpack.c.h.b16 %v1654
    %v1958 = vunpack.c.l.b16 %v1655
    %v1959 = vunpack.c.h.b16 %v1655
    %v1960 = vunpack.c.l.b16 %v1656
    %v1961 = vunpack.c.h.b16 %v1656
    %v1962 = vunpack.c.l.b16 %v1657
    %v1963 = vunpack.c.h.b16 %v1657
    %v1964 = vunpack.c.l.b16 %v1658
    %v1965 = vunpack.c.h.b16 %v1658
    %v1966 = vunpack.c.l.b16 %v1659
    %v1967 = vunpack.c.h.b16 %v1659
    %v1968 = vunpack.c.l.b16 %v1660
    %v1969 = vunpack.c.h.b16 %v1660
    %v1970 = vunpack.c.l.b16 %v1661
    %v1971 = vunpack.c.h.b16 %v1661
    %v1972 = vunpack.c.l.b16 %v1662
    %v1973 = vunpack.c.h.b16 %v1662
    %v1974 = vunpack.c.l.b16 %v1663
    %v1975 = vunpack.c.h.b16 %v1663
    %v1976 = vunpack.c.l.b16 %v1664
    %v1977 = vunpack.c.h.b16 %v1664
    %v1978 = vunpack.c.l.b16 %v1665
    %v1979 = vunpack.c.h.b16 %v1665
    %v1980 = vunpack.c.l.b16 %v1666
    %v1981 = vunpack.c.h.b16 %v1666
    %v1982 = vunpack.c.l.b16 %v1667
    %v1983 = vunpack.c.h.b16 %v1667
    %v1984 = vunpack.c.l.b16 %v1668
    %v1985 = vunpack.c.h.b16 %v1668
    %v1986 = vunpack.c.l.b16 %v1669
    %v1987 = vunpack.c.h.b16 %v1669
    %v1988 = vunpack.c.l.b16 %v1670
    %v1989 = vunpack.c.h.b16 %v1670
    %v1990 = vunpack.c.l.b16 %v1671
    %v1991 = vunpack.c.h.b16 %v1671
    %v1992 = vunpack.c.l.b16 %v1672
    %v1993 = vunpack.c.h.b16 %v1672
    %v1994 = vunpack.c.l.b16 %v1673
    %v1995 = vunpack.c.h.b16 %v1673
    %v1996 = vunpack.c.l.b16 %v1674
    %v1997 = vunpack.c.h.b16 %v1674
    %v1998 = vunpack.c.l.b16 %v1675
    %v1999 = vunpack.c.h.b16 %v1675
    %v2000 = vunpack.c.l.b16 %v1676
    %v2001 = vunpack.c.h.b16 %v1676
    %v2002 = vunpack.c.l.b16 %v1677
    %v2003 = vunpack.c.h.b16 %v1677
    %v2004 = vunpack.c.l.b16 %v1678
    %v2005 = vunpack.c.h.b16 %v1678
    %v2006 = vunpack.c.l.b16 %v1679
    %v2007 = vunpack.c.h.b16 %v1679
    %v2008 = vunpack.c.l.b16 %v1680
    %v2009 = vunpack.c.h.b16 %v1680
    %v2010 = vunpack.c.l.b16 %v1681
    %v2011 = vunpack.c.h.b16 %v1681
    %v2012 = vunpack.c.l.b16 %v1682
    %v2013 = vunpack.c.h.b16 %v1682
    %v2014 = vunpack.c.l.b16 %v1683
    %v2015 = vunpack.c.h.b16 %v1683
    %v2016 = vunpack.c.l.b16 %v1684
    %v2017 = vunpack.c.h.b16 %v1684
    %v2018 = vunpack.c.l.b16 %v1685
    %v2019 = vunpack.c.h.b16 %v1685
    %v2020 = vunpack.c.l.b16 %v1686
    %v2021 = vunpack.c.h.b16 %v1686
    %v2022 = vunpack.c.l.b16 %v1687
    %v2023 = vunpack.c.h.b16 %v1687
    %v2024 = vunpack.c.l.b16 %v1688
    %v2025 = vunpack.c.h.b16 %v1688
    %v2026 = vunpack.c.l.b16 %v1689
    %v2027 = vunpack.c.h.b16 %v1689
    %v2028 = vunpack.c.l.b16 %v1690
    %v2029 = vunpack.c.h.b16 %v1690
    %v2030 = vunpack.c.l.b16 %v1691
    %v2031 = vunpack.c.h.b16 %v1691
    %v2032 = vunpack.c.l.b16 %v1692
    %v2033 = vunpack.c.h.b16 %v1692
    %v2034 = vunpack.c.l.b16 %v1693
    %v2035 = vunpack.c.h.b16 %v1693
    %v2036 = vunpack.c.l.b16 %v1694
    %v2037 = vunpack.c.h.b16 %v1694
    %v2038 = vunpack.c.l.b16 %v1695
    %v2039 = vunpack.c.h.b16 %v1695
    %v2040 = vunpack.c.l.b16 %v1696
    %v2041 = vunpack.c.h.b16 %v1696
    %v2042 = vunpack.c.l.b16 %v1697
    %v2043 = vunpack.c.h.b16 %v1697
    %v2044 = vunpack.c.l.b16 %v1698
    %v2045 = vunpack.c.h.b16 %v1698
    %v2046 = vunpack.c.l.b16 %v1699
    %v2047 = vunpack.c.h.b16 %v1699
    %v2048 = vunpack.c.l.b16 %v1700
    %v2049 = vunpack.c.h.b16 %v1700
    %v2050 = vunpack.c.l.b16 %v1701
    %v2051 = vunpack.c.h.b16 %v1701
    %v2052 = vunpack.c.l.b16 %v1702
    %v2053 = vunpack.c.h.b16 %v1702
    %v2054 = vunpack.c.l.b16 %v1703
    %v2055 = vunpack.c.h.b16 %v1703
    %v2056 = vunpack.c.l.b16 %v1704
    %v2057 = vunpack.c.h.b16 %v1704
    %v2058 = vunpack.c.l.b16 %v1705
    %v2059 = vunpack.c.h.b16 %v1705
    %v2060 = vunpack.c.l.b16 %v1706
    %v2061 = vunpack.c.h.b16 %v1706
    %v2062 = vunpack.c.l.b16 %v1707
    %v2063 = vunpack.c.h.b16 %v1707
    %v2064 = vunpack.c.l.b16 %v1708
    %v2065 = vunpack.c.h.b16 %v1708
    %v2066 = vunpack.c.l.b16 %v1709
    %v2067 = vunpack.c.h.b16 %v1709
    %v2068 = vunpack.c.l.b16 %v1710
    %v2069 = vunpack.c.h.b16 %v1710
    %v2070 = vunpack.c.l.b16 %v1711
    %v2071 = vunpack.c.h.b16 %v1711
    %v2072 = vunpack.c.l.b16 %v1712
    %v2073 = vunpack.c.h.b16 %v1712
    %v2074 = vunpack.c.l.b16 %v1713
    %v2075 = vunpack.c.h.b16 %v1713
    %v2076 = vunpack.c.l.b16 %v1714
    %v2077 = vunpack.c.h.b16 %v1714
    %v2078 = vunpack.c.l.b16 %v1715
    %v2079 = vunpack.c.h.b16 %v1715
    %v2080 = vunpack.c.l.b16 %v1716
    %v2081 = vunpack.c.h.b16 %v1716
    %v2082 = vunpack.c.l.b16 %v1717
    %v2083 = vunpack.c.h.b16 %v1717
    %v2084 = vunpack.c.l.b16 %v1718
    %v2085 = vunpack.c.h.b16 %v1718
    %v2086 = vunpack.c.l.b16 %v1719
    %v2087 = vunpack.c.h.b16 %v1719
    %v2088 = vunpack.c.l.b16 %v1720
    %v2089 = vunpack.c.h.b16 %v1720
    %v2090 = vunpack.c.l.b16 %v1721
    %v2091 = vunpack.c.h.b16 %v1721
    %v2092 = vunpack.c.l.b16 %v1722
    %v2093 = vunpack.c.h.b16 %v1722
    %v2094 = vunpack.c.l.b16 %v1723
    %v2095 = vunpack.c.h.b16 %v1723
    %v2096 = vunpack.c.l.b16 %v1724
    %v2097 = vunpack.c.h.b16 %v1724
    %v2098 = vunpack.c.l.b16 %v1725
    %v2099 = vunpack.c.h.b16 %v1725
    %v2100 = vunpack.c.l.b16 %v1726
    %v2101 = vunpack.c.h.b16 %v1726
    %v2102 = vunpack.c.l.b16 %v1727
    %v2103 = vunpack.c.h.b16 %v1727
    %v2104 = vunpack.c.l.b16 %v1728
    %v2105 = vunpack.c.h.b16 %v1728
    %v2106 = vunpack.c.l.b16 %v1729
    %v2107 = vunpack.c.h.b16 %v1729
    %v2108 = vunpack.c.l.b16 %v1730
    %v2109 = vunpack.c.h.b16 %v1730
    %v2110 = vunpack.c.l.b16 %v1731
    %v2111 = vunpack.c.h.b16 %v1731
    %v2112 = vunpack.c.l.b16 %v1732
    %v2113 = vunpack.c.h.b16 %v1732
    %v2114 = vunpack.c.l.b16 %v1733
    %v2115 = vunpack.c.h.b16 %v1733
    %v2116 = vunpack.c.l.b16 %v1734
    %v2117 = vunpack.c.h.b16 %v1734
    %v2118 = vunpack.c.l.b16 %v1735
    %v2119 = vunpack.c.h.b16 %v1735
    %v2120 = vunpack.c.l.b16 %v1736
    %v2121 = vunpack.c.h.b16 %v1736
    %v2122 = vunpack.c.l.b16 %v1737
    %v2123 = vunpack.c.h.b16 %v1737
    %v2124 = vunpack.c.l.b16 %v1738
    %v2125 = vunpack.c.h.b16 %v1738
    %v2126 = vunpack.c.l.b16 %v1739
    %v2127 = vunpack.c.h.b16 %v1739
    %v2128 = vunpack.c.l.b16 %v1740
    %v2129 = vunpack.c.h.b16 %v1740
    %v2130 = vunpack.c.l.b16 %v1741
    %v2131 = vunpack.c.h.b16 %v1741
    %v2132 = vunpack.c.l.b16 %v1742
    %v2133 = vunpack.c.h.b16 %v1742
    %v2134 = vunpack.c.l.b16 %v1743
    %v2135 = vunpack.c.h.b16 %v1743
    %v2136 = vunpack.c.l.b16 %v1744
    %v2137 = vunpack.c.h.b16 %v1744
    %v2138 = vunpack.c.l.b16 %v1745
    %v2139 = vunpack.c.h.b16 %v1745
    %v2140 = vpack.c.b16 %v1888, %v1884
    %v2141 = vpack.c.b16 %v1889, %v1885
    %v2142 = vpack.c.b16 %v1890, %v1886
    %v2143 = vpack.c.b16 %v1891, %v1887
    %v2144 = vpack.c.b16 %v1896, %v1892
    %v2145 = vpack.c.b16 %v1897, %v1893
    %v2146 = vpack.c.b16 %v1898, %v1894
    %v2147 = vpack.c.b16 %v1899, %v1895
    %v2148 = vpack.c.b16 %v1904, %v1900
    %v2149 = vpack.c.b16 %v1905, %v1901
    %v2150 = vpack.c.b16 %v1906, %v1902
    %v2151 = vpack.c.b16 %v1907, %v1903
    %v2152 = vpack.c.b16 %v1912, %v1908
    %v2153 = vpack.c.b16 %v1913, %v1909
    %v2154 = vpack.c.b16 %v1914, %v1910
    %v2155 = vpack.c.b16 %v1915, %v1911
    %v2156 = vpack.c.b16 %v1920, %v1916
    %v2157 = vpack.c.b16 %v1921, %v1917
    %v2158 = vpack.c.b16 %v1922, %v1918
    %v2159 = vpack.c.b16 %v1923, %v1919
    %v2160 = vpack.c.b16 %v1928, %v1924
    %v2161 = vpack.c.b16 %v1929, %v1925
    %v2162 = vpack.c.b16 %v1930, %v1926
    %v2163 = vpack.c.b16 %v1931, %v1927
    %v2164 = vpack.c.b16 %v1936, %v1932
    %v2165 = vpack.c.b16 %v1937, %v1933
    %v2166 = vpack.c.b16 %v1938, %v1934
    %v2167 = vpack.c.b16 %v1939, %v1935
    %v2168 = vpack.c.b16 %v1944, %v1940
    %v2169 = vpack.c.b16 %v1945, %v1941
    %v2170 = vpack.c.b16 %v1946, %v1942
    %v2171 = vpack.c.b16 %v1947, %v1943
    %v2172 = vpack.c.b16 %v1952, %v1948
    %v2173 = vpack.c.b16 %v1953, %v1949
    %v2174 = vpack.c.b16 %v1954, %v1950
    %v2175 = vpack.c.b16 %v1955, %v1951
    %v2176 = vpack.c.b16 %v1960, %v1956
    %v2177 = vpack.c.b16 %v1961, %v1957
    %v2178 = vpack.c.b16 %v1962, %v1958
    %v2179 = vpack.c.b16 %v1963, %v1959
    %v2180 = vpack.c.b16 %v1968, %v1964
    %v2181 = vpack.c.b16 %v1969, %v1965
    %v2182 = vpack.c.b16 %v1970, %v1966
    %v2183 = vpack.c.b16 %v1971, %v1967
    %v2184 = vpack.c.b16 %v1976, %v1972
    %v2185 = vpack.c.b16 %v1977, %v1973
    %v2186 = vpack.c.b16 %v1978, %v1974
    %v2187 = vpack.c.b16 %v1979, %v1975
    %v2188 = vpack.c.b16 %v1984, %v1980
    %v2189 = vpack.c.b16 %v1985, %v1981
    %v2190 = vpack.c.b16 %v1986, %v1982
    %v2191 = vpack.c.b16 %v1987, %v1983
    %v2192 = vpack.c.b16 %v1992, %v1988
    %v2193 = vpack.c.b16 %v1993, %v1989
    %v2194 = vpack.c.b16 %v1994, %v1990
    %v2195 = vpack.c.b16 %v1995, %v1991
    %v2196 = vpack.c.b16 %v2000, %v1996
    %v2197 = vpack.c.b16 %v2001, %v1997
    %v2198 = vpack.c.b16 %v2002, %v1998
    %v2199 = vpack.c.b16 %v2003, %v1999
    %v2200 = vpack.c.b16 %v2008, %v2004
    %v2201 = vpack.c.b16 %v2009, %v2005
    %v2202 = vpack.c.b16 %v2010, %v2006
    %v2203 = vpack.c.b16 %v2011, %v2007
    %v2204 = vpack.c.b16 %v2016, %v2012
    %v2205 = vpack.c.b16 %v2017, %v2013
    %v2206 = vpack.c.b16 %v2018, %v2014
    %v2207 = vpack.c.b16 %v2019, %v2015
    %v2208 = vpack.c.b16 %v2024, %v2020
    %v2209 = vpack.c.b16 %v2025, %v2021
    %v2210 = vpack.c.b16 %v2026, %v2022
    %v2211 = vpack.c.b16 %v2027, %v2023
    %v2212 = vpack.c.b16 %v2032, %v2028
    %v2213 = vpack.c.b16 %v2033, %v2029
    %v2214 = vpack.c.b16 %v2034, %v2030
    %v2215 = vpack.c.b16 %v2035, %v2031
    %v2216 = vpack.c.b16 %v2040, %v2036
    %v2217 = vpack.c.b16 %v2041, %v2037
    %v2218 = vpack.c.b16 %v2042, %v2038
    %v2219 = vpack.c.b16 %v2043, %v2039
    %v2220 = vpack.c.b16 %v2048, %v2044
    %v2221 = vpack.c.b16 %v2049, %v2045
    %v2222 = vpack.c.b16 %v2050, %v2046
    %v2223 = vpack.c.b16 %v2051, %v2047
    %v2224 = vpack.c.b16 %v2056, %v2052
    %v2225 = vpack.c.b16 %v2057, %v2053
    %v2226 = vpack.c.b16 %v2058, %v2054
    %v2227 = vpack.c.b16 %v2059, %v2055
    %v2228 = vpack.c.b16 %v2064, %v2060
    %v2229 = vpack.c.b16 %v2065, %v2061
    %v2230 = vpack.c.b16 %v2066, %v2062
    %v2231 = vpack.c.b16 %v2067, %v2063
    %v2232 = vpack.c.b16 %v2072, %v2068
    %v2233 = vpack.c.b16 %v2073, %v2069
    %v2234 = vpack.c.b16 %v2074, %v2070
    %v2235 = vpack.c.b16 %v2075, %v2071
    %v2236 = vpack.c.b16 %v2080, %v2076
    %v2237 = vpack.c.b16 %v2081, %v2077
    %v2238 = vpack.c.b16 %v2082, %v2078
    %v2239 = vpack.c.b16 %v2083, %v2079
    %v2240 = vpack.c.b16 %v2088, %v2084
    %v2241 = vpack.c.b16 %v2089, %v2085
    %v2242 = vpack.c.b16 %v2090, %v2086
    %v2243 = vpack.c.b16 %v2091, %v2087
    %v2244 = vpack.c.b16 %v2096, %v2092
    %v2245 = vpack.c.b16 %v2097, %v2093
    %v2246 = vpack.c.b16 %v2098, %v2094
    %v2247 = vpack.c.b16 %v2099, %v2095
    %v2248 = vpack.c.b16 %v2104, %v2100
    %v2249 = vpack.c.b16 %v2105, %v2101
    %v2250 = vpack.c.b16 %v2106, %v2102
    %v2251 = vpack.c.b16 %v2107, %v2103
    %v2252 = vpack.c.b16 %v2112, %v2108
    %v2253 = vpack.c.b16 %v2113, %v2109
    %v2254 = vpack.c.b16 %v2114, %v2110
    %v2255 = vpack.c.b16 %v2115, %v2111
    %v2256 = vpack.c.b16 %v2120, %v2116
    %v2257 = vpack.c.b16 %v2121, %v2117
    %v2258 = vpack.c.b16 %v2122, %v2118
    %v2259 = vpack.c.b16 %v2123, %v2119
    %v2260 = vpack.c.b16 %v2128, %v2124
    %v2261 = vpack.c.b16 %v2129, %v2125
    %v2262 = vpack.c.b16 %v2130, %v2126
    %v2263 = vpack.c.b16 %v2131, %v2127
    %v2264 = vpack.c.b16 %v2136, %v2132
    %v2265 = vpack.c.b16 %v2137, %v2133
    %v2266 = vpack.c.b16 %v2138, %v2134
    %v2267 = vpack.c.b16 %v2139, %v2135
    %2396 = vmatpush.bf16.msra.mxu0 %v2168
    %2397 = vmatpush.bf16.msra.mxu0 %v2164
    %2398 = vmatpush.bf16.msra.mxu0 %v2160
    %2399 = vmatpush.bf16.msra.mxu0 %v2156
    %2400 = vmatpush.bf16.msra.mxu0 %v2152
    %2401 = vmatpush.bf16.msra.mxu0 %v2148
    %2402 = vmatpush.bf16.msra.mxu0 %v2144
    %2403 = vmatpush.bf16.msra.mxu0 %v2140
    %2404 = vmatmul.bf16.gmra.mxu0 %v1614
    %v2405 = vpop.f32.mrf.mxu0
    %v2406 = vadd.f32 %v1748, %v2405
    %v2407 = vpop.f32.mrf.mxu0
    %2408 = vdwg.mxu0
    %2409 = vmatpush.bf16.msra.mxu0 %v2200
    %2410 = vmatpush.bf16.msra.mxu0 %v2196
    %2411 = vmatpush.bf16.msra.mxu0 %v2192
    %2412 = vmatpush.bf16.msra.mxu0 %v2188
    %2413 = vmatpush.bf16.msra.mxu0 %v2184
    %2414 = vmatpush.bf16.msra.mxu0 %v2180
    %2415 = vmatpush.bf16.msra.mxu0 %v2176
    %2416 = vmatpush.bf16.msra.mxu0 %v2172
    %2417 = vmatmul.bf16.gmra.mxu0 %v1615
    %v2418 = vpop.f32.mrf.mxu0
    %v2419 = vadd.f32 %v2406, %v2418
    %v2420 = vpop.f32.mrf.mxu0
    %2421 = vdwg.mxu0
    %2422 = vmatpush.bf16.msra.mxu0 %v2232
    %2423 = vmatpush.bf16.msra.mxu0 %v2228
    %2424 = vmatpush.bf16.msra.mxu0 %v2224
    %2425 = vmatpush.bf16.msra.mxu0 %v2220
    %2426 = vmatpush.bf16.msra.mxu0 %v2216
    %2427 = vmatpush.bf16.msra.mxu0 %v2212
    %2428 = vmatpush.bf16.msra.mxu0 %v2208
    %2429 = vmatpush.bf16.msra.mxu0 %v2204
    %2430 = vmatmul.bf16.gmra.mxu0 %v1616
    %v2431 = vpop.f32.mrf.mxu0
    %v2432 = vadd.f32 %v2419, %v2431
    %v2433 = vpop.f32.mrf.mxu0
    %2434 = vdwg.mxu0
    %2435 = vmatpush.bf16.msra.mxu0 %v2264
    %2436 = vmatpush.bf16.msra.mxu0 %v2260
    %2437 = vmatpush.bf16.msra.mxu0 %v2256
    %2438 = vmatpush.bf16.msra.mxu0 %v2252
    %2439 = vmatpush.bf16.msra.mxu0 %v2248
    %2440 = vmatpush.bf16.msra.mxu0 %v2244
    %2441 = vmatpush.bf16.msra.mxu0 %v2240
    %2442 = vmatpush.bf16.msra.mxu0 %v2236
    %2443 = vmatmul.bf16.gmra.mxu0 %v1617
    %v2444 = vpop.f32.mrf.mxu0
    %v2445 = vadd.f32 %v2432, %v2444
    %v2446 = vpop.f32.mrf.mxu0
    %2447 = vdwg.mxu0
    %2448 = vmatpush.bf16.msra.mxu0 %v2169
    %2449 = vmatpush.bf16.msra.mxu0 %v2165
    %2450 = vmatpush.bf16.msra.mxu0 %v2161
    %2451 = vmatpush.bf16.msra.mxu0 %v2157
    %2452 = vmatpush.bf16.msra.mxu0 %v2153
    %2453 = vmatpush.bf16.msra.mxu0 %v2149
    %2454 = vmatpush.bf16.msra.mxu0 %v2145
    %2455 = vmatpush.bf16.msra.mxu0 %v2141
    %2456 = vmatmul.bf16.gmra.mxu0 %v1614
    %v2457 = vpop.f32.mrf.mxu0
    %v2458 = vadd.f32 %v1749, %v2457
    %v2459 = vpop.f32.mrf.mxu0
    %2460 = vdwg.mxu0
    %2461 = vmatpush.bf16.msra.mxu0 %v2201
    %2462 = vmatpush.bf16.msra.mxu0 %v2197
    %2463 = vmatpush.bf16.msra.mxu0 %v2193
    %2464 = vmatpush.bf16.msra.mxu0 %v2189
    %2465 = vmatpush.bf16.msra.mxu0 %v2185
    %2466 = vmatpush.bf16.msra.mxu0 %v2181
    %2467 = vmatpush.bf16.msra.mxu0 %v2177
    %2468 = vmatpush.bf16.msra.mxu0 %v2173
    %2469 = vmatmul.bf16.gmra.mxu0 %v1615
    %v2470 = vpop.f32.mrf.mxu0
    %v2471 = vadd.f32 %v2458, %v2470
    %v2472 = vpop.f32.mrf.mxu0
    %2473 = vdwg.mxu0
    %2474 = vmatpush.bf16.msra.mxu0 %v2233
    %2475 = vmatpush.bf16.msra.mxu0 %v2229
    %2476 = vmatpush.bf16.msra.mxu0 %v2225
    %2477 = vmatpush.bf16.msra.mxu0 %v2221
    %2478 = vmatpush.bf16.msra.mxu0 %v2217
    %2479 = vmatpush.bf16.msra.mxu0 %v2213
    %2480 = vmatpush.bf16.msra.mxu0 %v2209
    %2481 = vmatpush.bf16.msra.mxu0 %v2205
    %2482 = vmatmul.bf16.gmra.mxu0 %v1616
    %v2483 = vpop.f32.mrf.mxu0
    %v2484 = vadd.f32 %v2471, %v2483
    %v2485 = vpop.f32.mrf.mxu0
    %2486 = vdwg.mxu0
    %2487 = vmatpush.bf16.msra.mxu0 %v2265
    %2488 = vmatpush.bf16.msra.mxu0 %v2261
    %2489 = vmatpush.bf16.msra.mxu0 %v2257
    %2490 = vmatpush.bf16.msra.mxu0 %v2253
    %2491 = vmatpush.bf16.msra.mxu0 %v2249
    %2492 = vmatpush.bf16.msra.mxu0 %v2245
    %2493 = vmatpush.bf16.msra.mxu0 %v2241
    %2494 = vmatpush.bf16.msra.mxu0 %v2237
    %2495 = vmatmul.bf16.gmra.mxu0 %v1617
    %v2496 = vpop.f32.mrf.mxu0
    %v2497 = vadd.f32 %v2484, %v2496
    %v2498 = vpop.f32.mrf.mxu0
    %2499 = vdwg.mxu0
    %2500 = vmatpush.bf16.msra.mxu0 %v2170
    %2501 = vmatpush.bf16.msra.mxu0 %v2166
    %2502 = vmatpush.bf16.msra.mxu0 %v2162
    %2503 = vmatpush.bf16.msra.mxu0 %v2158
    %2504 = vmatpush.bf16.msra.mxu0 %v2154
    %2505 = vmatpush.bf16.msra.mxu0 %v2150
    %2506 = vmatpush.bf16.msra.mxu0 %v2146
    %2507 = vmatpush.bf16.msra.mxu0 %v2142
    %2508 = vmatmul.bf16.gmra.mxu0 %v1614
    %v2509 = vpop.f32.mrf.mxu0
    %v2510 = vadd.f32 %v1750, %v2509
    %v2511 = vpop.f32.mrf.mxu0
    %2512 = vdwg.mxu0
    %2513 = vmatpush.bf16.msra.mxu0 %v2202
    %2514 = vmatpush.bf16.msra.mxu0 %v2198
    %2515 = vmatpush.bf16.msra.mxu0 %v2194
    %2516 = vmatpush.bf16.msra.mxu0 %v2190
    %2517 = vmatpush.bf16.msra.mxu0 %v2186
    %2518 = vmatpush.bf16.msra.mxu0 %v2182
    %2519 = vmatpush.bf16.msra.mxu0 %v2178
    %2520 = vmatpush.bf16.msra.mxu0 %v2174
    %2521 = vmatmul.bf16.gmra.mxu0 %v1615
    %v2522 = vpop.f32.mrf.mxu0
    %v2523 = vadd.f32 %v2510, %v2522
    %v2524 = vpop.f32.mrf.mxu0
    %2525 = vdwg.mxu0
    %2526 = vmatpush.bf16.msra.mxu0 %v2234
    %2527 = vmatpush.bf16.msra.mxu0 %v2230
    %2528 = vmatpush.bf16.msra.mxu0 %v2226
    %2529 = vmatpush.bf16.msra.mxu0 %v2222
    %2530 = vmatpush.bf16.msra.mxu0 %v2218
    %2531 = vmatpush.bf16.msra.mxu0 %v2214
    %2532 = vmatpush.bf16.msra.mxu0 %v2210
    %2533 = vmatpush.bf16.msra.mxu0 %v2206
    %2534 = vmatmul.bf16.gmra.mxu0 %v1616
    %v2535 = vpop.f32.mrf.mxu0
    %v2536 = vadd.f32 %v2523, %v2535
    %v2537 = vpop.f32.mrf.mxu0
    %2538 = vdwg.mxu0
    %2539 = vmatpush.bf16.msra.mxu0 %v2266
    %2540 = vmatpush.bf16.msra.mxu0 %v2262
    %2541 = vmatpush.bf16.msra.mxu0 %v2258
    %2542 = vmatpush.bf16.msra.mxu0 %v2254
    %2543 = vmatpush.bf16.msra.mxu0 %v2250
    %2544 = vmatpush.bf16.msra.mxu0 %v2246
    %2545 = vmatpush.bf16.msra.mxu0 %v2242
    %2546 = vmatpush.bf16.msra.mxu0 %v2238
    %2547 = vmatmul.bf16.gmra.mxu0 %v1617
    %v2548 = vpop.f32.mrf.mxu0
    %v2549 = vadd.f32 %v2536, %v2548
    %v2550 = vpop.f32.mrf.mxu0
    %2551 = vdwg.mxu0
    %2552 = vmatpush.bf16.msra.mxu0 %v2171
    %2553 = vmatpush.bf16.msra.mxu0 %v2167
    %2554 = vmatpush.bf16.msra.mxu0 %v2163
    %2555 = vmatpush.bf16.msra.mxu0 %v2159
    %2556 = vmatpush.bf16.msra.mxu0 %v2155
    %2557 = vmatpush.bf16.msra.mxu0 %v2151
    %2558 = vmatpush.bf16.msra.mxu0 %v2147
    %2559 = vmatpush.bf16.msra.mxu0 %v2143
    %2560 = vmatmul.bf16.gmra.mxu0 %v1614
    %v2561 = vpop.f32.mrf.mxu0
    %v2562 = vadd.f32 %v1751, %v2561
    %v2563 = vpop.f32.mrf.mxu0
    %2564 = vdwg.mxu0
    %2565 = vmatpush.bf16.msra.mxu0 %v2203
    %2566 = vmatpush.bf16.msra.mxu0 %v2199
    %2567 = vmatpush.bf16.msra.mxu0 %v2195
    %2568 = vmatpush.bf16.msra.mxu0 %v2191
    %2569 = vmatpush.bf16.msra.mxu0 %v2187
    %2570 = vmatpush.bf16.msra.mxu0 %v2183
    %2571 = vmatpush.bf16.msra.mxu0 %v2179
    %2572 = vmatpush.bf16.msra.mxu0 %v2175
    %2573 = vmatmul.bf16.gmra.mxu0 %v1615
    %v2574 = vpop.f32.mrf.mxu0
    %v2575 = vadd.f32 %v2562, %v2574
    %v2576 = vpop.f32.mrf.mxu0
    %2577 = vdwg.mxu0
    %2578 = vmatpush.bf16.msra.mxu0 %v2235
    %2579 = vmatpush.bf16.msra.mxu0 %v2231
    %2580 = vmatpush.bf16.msra.mxu0 %v2227
    %2581 = vmatpush.bf16.msra.mxu0 %v2223
    %2582 = vmatpush.bf16.msra.mxu0 %v2219
    %2583 = vmatpush.bf16.msra.mxu0 %v2215
    %2584 = vmatpush.bf16.msra.mxu0 %v2211
    %2585 = vmatpush.bf16.msra.mxu0 %v2207
    %2586 = vmatmul.bf16.gmra.mxu0 %v1616
    %v2587 = vpop.f32.mrf.mxu0
    %v2588 = vadd.f32 %v2575, %v2587
    %v2589 = vpop.f32.mrf.mxu0
    %2590 = vdwg.mxu0
    %2591 = vmatpush.bf16.msra.mxu0 %v2267
    %2592 = vmatpush.bf16.msra.mxu0 %v2263
    %2593 = vmatpush.bf16.msra.mxu0 %v2259
    %2594 = vmatpush.bf16.msra.mxu0 %v2255
    %2595 = vmatpush.bf16.msra.mxu0 %v2251
    %2596 = vmatpush.bf16.msra.mxu0 %v2247
    %2597 = vmatpush.bf16.msra.mxu0 %v2243
    %2598 = vmatpush.bf16.msra.mxu0 %v2239
    %2599 = vmatmul.bf16.gmra.mxu0 %v1617
    %v2600 = vpop.f32.mrf.mxu0
    %v2601 = vadd.f32 %v2588, %v2600
    %v2602 = vpop.f32.mrf.mxu0
    %2603 = vdwg.mxu0
    %v2604 = vmul.f32 %v2445, 0.2
    %v2605 = vmul.f32 %v2497, 0.2
    %v2606 = vmul.f32 %v2549, 0.2
    %v2607 = vmul.f32 %v2601, 0.2
    %v2608 = vmax.f32 %v2445, %v2604
    %v2609 = vmax.f32 %v2497, %v2605
    %v2610 = vmax.f32 %v2549, %v2606
    %v2611 = vmax.f32 %v2601, %v2607
    %v2612 = vld [vmem:[%s8] sm:$0xf]
    %v2614 = vperm.slane %v2612, 0
    %v2615 = vperm.slane %v2612, 1
    %v2616 = vperm.slane %v2612, 2
    %v2617 = vperm.slane %v2612, 3
    %v2622 = vmul.f32 %v2608, %v2614
    %v2623 = vmul.f32 %v2609, %v2615
    %v2624 = vmul.f32 %v2610, %v2616
    %v2625 = vmul.f32 %v2611, %v2617
    %vm2626 = vcmask 1043456
    %v2627 = vsel %vm2626, %v2622, 0.0
    %v2628 = vsel %vm2626, %v2623, 0.0
    %v2629 = vadd.f32 %v2627, %v2628
    %v2630 = vsel %vm2626, %v2624, 0.0
    %v2631 = vadd.f32 %v2629, %v2630
    %v2632 = vsel %vm2626, %v2625, 0.0
    %v2633 = vadd.f32 %v2631, %v2632
    %2634 = vadd.xlane.f32.xlu0 %v2633
    %v2635 = vpop.xlane.xlu0 %2634
    %v2636 = vld [vmem:[#allocation2] sm:$0x1]
    %v2638 = vperm.slane %v2636, 0
    %v2640 = vadd.f32 %v2635, %v2638
    %v2641 = vxor.u32 %v2640, 2147483648
    %v2642 = vmul.f32 %v2641, 1.442695
    %v2643 = vpow.pop %v2642
    %v2644 = vadd.f32 %v2643, 1.0
    %v2645 = vrcp.pop %v2644
    %v2646 = vmul.f32 %v2644, %v2645
    %v2647 = vsub.f32 1.0, %v2646
    %v2648 = vmul.f32 %v2645, %v2647
    %v2649 = vadd.f32 %v2645, %v2648
    %vm2650 = vweird.f32 %v2644
    %vm2651 = vweird.f32 %v2645
    %vm2652 = vmor %vm2650, %vm2651
    %v2653 = vsel %vm2652, %v2645, %v2649
    %v2654 = vand.u32 2147483647, %v2644
    %vm2655 = vcmp.eq.f32.partialorder %v2654, 8.507059e+37
    %v2656 = vand.u32 %v2644, 2147483648
    %v2657 = vor.u32 1.1754944e-38, %v2656
    %v2658 = vsel %vm2655, %v2657, %v2653
    %v2659 = vmul.f32 1.0, %v2658
    %vm2660 = vcmask 3072
    %2661 = vst.msk [vmem:[%s10] sm:$0xf] %vm2660, %v2659
    // Predicated region
    $region54: #{discriminator_forward.1} parent=1 // pred_check
      _
    $region55: #{discriminator_forward.1} parent=1 // pred_check_branch
      %2663 = sbr.rel (0) target = $region57
    $region56: #{discriminator_forward.1} parent=1 // pred_region
      _
    $region57: #{discriminator_forward.1} parent=1 // pred_fallthru
      _
    // Predicated region
    $region58: #{discriminator_forward.1} parent=1 // pred_check
      _
    $region59: #{discriminator_forward.1} parent=1 // pred_check_branch
      %2665 = sbr.rel (0) target = $region61
    $region60: #{discriminator_forward.1} parent=1 // pred_region
      _
    $region61: #{discriminator_forward.1} parent=1 // pred_fallthru
      _
    %2666 = vsyncpa [#allocation4], 1
    %2667 = vsyncpa [#allocation6], 1

</llo_original>
